<compile_context>
chip_gen: v5e
topology: v5e:2x2
jax: 0.10.0
libtpu: 0.0.40
codegen_flags: <defaults>
</compile_context>

<pallas_src>
import jax
import jax.numpy as jnp
from jax import lax
from jax.experimental import pallas as pl
from jax.experimental.pallas import tpu as pltpu

LANES = 128
SUBLANES = 8
NSTREAMS = 10   # px,py,pw,ph,pc, code, tx,ty,tw,th
NTERMS = 8      # sum_x,sum_y,sum_w,sum_h,sum_bce_obj,sum_bce_noobj,cnt_obj,cnt_noobj


def _round_up(x, m):
    return ((x + m - 1) // m) * m


def _chip_cfg():
    """(num_cores_for_parallel_axis, max block rows per grid step, vmem_limit_bytes)."""
    kind = ""
    try:
        kind = jax.devices()[0].device_kind.lower()
    except Exception:
        pass
    if "v5 lite" in kind or "v5lite" in kind or "v5e" in kind or "v6" in kind:
        return 1, 2048, 64 * 1024 * 1024        # single TC, 128 MiB VMEM
    if "v7" in kind or "7x" in kind:
        return 2, 1024, 40 * 1024 * 1024        # 2 TCs, 64 MiB VMEM
    if "v4" in kind or "v5p" in kind or "v5" in kind:
        return 2, 1024, 48 * 1024 * 1024        # megacore chips
    return 1, 1024, 40 * 1024 * 1024            # conservative default


# ----------------------------------------------------------------------------
# Pallas kernel: streaming per-cell decode + masked partial sums
# ----------------------------------------------------------------------------
def _make_yolo_kernel(unroll):
    def kernel(px_ref, py_ref, pw_ref, ph_ref, pc_ref,
               code_ref, tx_ref, ty_ref, tw_ref, th_ref, o_ref):
        # *_ref inputs: (block_grp, 8, 128) f32 tiles; o_ref: (NTERMS, 8, 128) resident acc.
        @pl.when(pl.program_id(1) == 0)
        def _():
            o_ref[...] = jnp.zeros_like(o_ref)

        block_grp = code_ref.shape[0]

        def body(g, acc):
            sx, sy, sw, sh, sbo, sbn, co, cn = acc
            px = px_ref[g]
            py = py_ref[g]
            pw = pw_ref[g]
            ph = ph_ref[g]
            pc = pc_ref[g]
            code = code_ref[g]          # +1 obj, -1 noobj, 0 ignored / padding
            tx = tx_ref[g]
            ty = ty_ref[g]
            tw = tw_ref[g]
            th = th_ref[g]

            om = jnp.maximum(code, 0.0)         # obj mask (0/1)
            nm = jnp.abs(code) - om             # noobj mask (0/1)

            xs = 0.5 * jnp.tanh(0.5 * px) + 0.5   # sigmoid via one EUP op
            ys = 0.5 * jnp.tanh(0.5 * py) + 0.5
            ws = jnp.clip(pw, -5.0, 5.0)
            hs = jnp.clip(ph, -5.0, 5.0)

            # Stable BCE-with-logits; torch.nn.BCELoss clamps each -log term at 100.
            #   softplus(z)  = log(1+exp(-|z|)) + relu(z)   -> -log(1 - sigmoid(z))
            #   softplus(-z) = softplus(z) - z              -> -log(sigmoid(z))
            sp = jnp.log(1.0 + jnp.exp(-jnp.abs(pc))) + jnp.maximum(pc, 0.0)
            bce_noobj = jnp.minimum(sp, 100.0)
            bce_obj = jnp.minimum(sp - pc, 100.0)

            dx = xs - tx
            dy = ys - ty
            dw = ws - tw
            dh = hs - th
            return (sx + om * (dx * dx),
                    sy + om * (dy * dy),
                    sw + om * (dw * dw),
                    sh + om * (dh * dh),
                    sbo + om * bce_obj,
                    sbn + nm * bce_noobj,
                    co + om,
                    cn + nm)

        zero = jnp.zeros((SUBLANES, LANES), jnp.float32)
        acc = lax.fori_loop(0, block_grp, body, (zero,) * NTERMS, unroll=unroll)
        for i in range(NTERMS):
            o_ref[i] += acc[i]

    return kernel


def yolo_loss_sums(streams, block_grp, num_cores, vmem_limit):
    """streams: 10 arrays of shape (ngrp, 8, 128) f32; returns the 8 global sums."""
    ngrp = streams[0].shape[0]
    n_inner = ngrp // (num_cores * block_grp)
    if block_grp % 4 == 0:
        unroll = 4
    elif block_grp % 2 == 0:
        unroll = 2
    else:
        unroll = 1

    in_spec = pl.BlockSpec((block_grp, SUBLANES, LANES),
                           lambda c, i: (c * n_inner + i, 0, 0))
    out_spec = pl.BlockSpec((NTERMS, SUBLANES, LANES), lambda c, i: (c, 0, 0))

    out = pl.pallas_call(
        _make_yolo_kernel(unroll),
        out_shape=jax.ShapeDtypeStruct((num_cores * NTERMS, SUBLANES, LANES), jnp.float32),
        grid_spec=pltpu.PrefetchScalarGridSpec(
            num_scalar_prefetch=0,
            grid=(num_cores, n_inner),
            in_specs=[in_spec] * NSTREAMS,
            out_specs=out_spec,
        ),
        compiler_params=pltpu.CompilerParams(
            dimension_semantics=("parallel", "arbitrary"),
            vmem_limit_bytes=vmem_limit,
        ),
    )(*streams)
    # tiny final reduce over cores / sublanes / lanes, fused inside the enclosing jit
    return out.reshape(num_cores, NTERMS, SUBLANES, LANES).sum(axis=(0, 2, 3))


# ----------------------------------------------------------------------------
# Vectorized target assignment, scattered directly into the padded flat layout
# ----------------------------------------------------------------------------
def iou_wo_center(w1, h1, w2, h2):
    inter = jnp.minimum(w1, w2) * jnp.minimum(h1, h2)
    union = w1 * h1 + w2 * h2 - inter + 1e-16
    return inter / union


def build_target_packed(nA, nH, nW, n_cells, n_pad, gts, scaled_anchors, ignore_threshold):
    """Returns flat (n_pad,) streams: code(+1 obj/-1 noobj/0 ignored), tx, ty, tw, th, and
    the gt array with its match counter updated.  (Recompiles per distinct nGts.)"""
    valid = jnp.arange(n_pad) < n_cells
    code = jnp.where(valid, -1.0, 0.0).astype(jnp.float32)
    tgt = [jnp.zeros((n_pad,), jnp.float32) for _ in range(4)]
    nGts = gts.shape[0]
    if nGts == 0:
        return code, tgt[0], tgt[1], tgt[2], tgt[3], gts

    gb = gts[:, 1:5]
    ious = iou_wo_center(gb[:, 2:3], gb[:, 3:4],
                         scaled_anchors[None, :, 0], scaled_anchors[None, :, 1])  # (nGts, nA)
    vals = ious.max(axis=1)
    best_n_all = jnp.argmax(ious, axis=1)

    # same assignment priority as torch: ascending anchor IoU, then (stable) descending
    # previous-scale match count; later writes win duplicate cells.
    ind = jnp.argsort(vals)
    ind = ind[jnp.argsort(-gts[ind, -1])]
    best_n = best_n_all[ind]
    gbs = gb[ind]
    batch = gts[ind, 0].astype(jnp.int32)
    ious_s = ious[ind]

    gis = (gbs[:, 0] * nW).astype(jnp.int32)
    gjs = (gbs[:, 1] * nH).astype(jnp.int32)

    # flat cell index in (nB, nA, nH, nW) C-order
    cell = ((batch * nA + best_n) * nH + gjs) * nW + gis                       # (nGts,)
    anc = jnp.arange(nA)
    cell_all = ((batch[:, None] * nA + anc[None, :]) * nH + gjs[:, None]) * nW + gis[:, None]

    # noobj -> ignored (0) for every anchor whose IoU with the gt exceeds the threshold
    ign_val = jnp.where(ious_s > ignore_threshold, 0.0, -1.0).astype(jnp.float32)
    code = code.at[cell_all.reshape(-1)].max(ign_val.reshape(-1))
    # assigned (best-anchor) cells -> obj (+1)
    code = code.at[cell].max(1.0)

    # emulate torch's last-write-wins on duplicate cells (order-independent otherwise)
    order = jnp.arange(nGts)
    later_same = (cell[None, :] == cell[:, None]) & (order[None, :] > order[:, None])
    is_win = ~jnp.any(later_same, axis=1)
    scat = jnp.where(is_win, cell, n_pad)              # losers -> out of bounds -> dropped

    aw = scaled_anchors[best_n, 0]
    ah = scaled_anchors[best_n, 1]
    tvals = [
        gbs[:, 0] - jnp.floor(gbs[:, 0]),   # torch uses frac() of the *normalized* cx/cy
        gbs[:, 1] - jnp.floor(gbs[:, 1]),
        jnp.log(gbs[:, 2] / aw + 1e-16),
        jnp.log(gbs[:, 3] / ah + 1e-16),
    ]
    tgt = [t.at[scat].set(v, mode="drop") for t, v in zip(tgt, tvals)]

    matched = jnp.zeros((nGts,), jnp.float32).at[ind].set(is_win.astype(jnp.float32))
    gts = gts.at[:, -1].add(matched)
    return code, tgt[0], tgt[1], tgt[2], tgt[3], gts


# ----------------------------------------------------------------------------
# One YOLO scale forward (YOLOLoss semantics, cls_num = 0) - fully on device
# ----------------------------------------------------------------------------
def yolo_loss_scale_forward(out, gt, anchors, obj_scale, noobj_scale, ignore_threshold,
                            reg_scale, num_cores, cap_rows, vmem_limit):
    nB, C, nH, nW = out.shape
    nA = anchors.shape[0]
    assert C == nA * 5
    n_cells = nB * nA * nH * nW

    # tiling: n_blocks steps of block_rows (<= cap_rows) rows of 128 lanes, split over cores
    rows_min = _round_up(-(-n_cells // LANES), SUBLANES)
    n_blocks = _round_up(-(-rows_min // cap_rows), num_cores)
    block_rows = _round_up(-(-rows_min // n_blocks), SUBLANES)
    rows = n_blocks * block_rows
    n_pad = rows * LANES
    ngrp = rows // SUBLANES
    block_grp = block_rows // SUBLANES

    code, tx, ty, tw, th, gt = build_target_packed(
        nA, nH, nW, n_cells, n_pad, gt, anchors, ignore_threshold)

    # prediction channel streams: one fused strided-slice + pad copy each (~20 B/cell total);
    # the target/mask streams above are already in their final layout (no extra copy).
    out_r = out.reshape(nB, nA, 5, nH, nW)
    pred_streams = [
        jnp.pad(out_r[:, :, k].reshape(-1), (0, n_pad - n_cells)) for k in range(5)
    ]
    streams = pred_streams + [code, tx, ty, tw, th]
    streams = [s.reshape(ngrp, SUBLANES, LANES) for s in streams]

    sums = yolo_loss_sums(streams, block_grp, num_cores, vmem_limit)
    sx, sy, sw, sh, sbo, sbn, cnt_obj, cnt_noobj = [sums[i] for i in range(NTERMS)]

    safe_obj = jnp.maximum(cnt_obj, 1.0)
    safe_noobj = jnp.maximum(cnt_noobj, 1.0)
    has_obj = cnt_obj > 0.0
    mean_obj = jnp.where(has_obj, sbo / safe_obj, 0.0)
    mean_noobj = jnp.where(cnt_noobj > 0.0, sbn / safe_noobj, 0.0)
    loss_conf = noobj_scale * mean_noobj + obj_scale * mean_obj
    loss_xy = jnp.where(has_obj, (sx + sy) / safe_obj, 0.0)
    loss_wh = jnp.where(has_obj, (sw + sh) / safe_obj, 0.0)
    total = jnp.where(has_obj,
                      cnt_obj * (reg_scale * (loss_xy + loss_wh) + loss_conf),
                      loss_conf)
    res = {"xy": loss_xy, "wh": loss_wh, "obj": mean_obj, "conf": loss_conf, "all": total}
    return res, total, gt


# ----------------------------------------------------------------------------
# LossAPI (loss = 'yolo')
# ----------------------------------------------------------------------------
class Cfg:
    obj_scale = 1.0
    noobj_scale = 100.0
    ignore_threshold = 0.5
    match_threshold = 0.5
    reg_scale = 1.0
    # deterministic synthetic anchors (normalized to image size)
    anchors = [
        [0.10, 0.15],
        [0.22, 0.30],
        [0.35, 0.50],
        [0.45, 0.35],
        [0.65, 0.75],
        [0.85, 0.60],
    ]
    anchor_divide = [[3, 4, 5], [0, 1, 2]]


class LossAPI:
    def __init__(self, cfg, loss="yolo"):
        # TODO(synk): 'yolo_iou'/'yolo_gou'/'yolo_com' variants and the infer=True path need
        # generalized_iou / box decoding, which the reference did not provide.
        assert loss == "yolo"
        self.cfg = cfg
        self.anchor_groups = tuple(
            jnp.array([cfg.anchors[i] for i in ind], dtype=jnp.float32)
            for ind in cfg.anchor_divide
        )
        self.not_match = 0

        num_cores, cap_rows, vmem_limit = _chip_cfg()
        obj_scale = float(cfg.obj_scale)
        noobj_scale = float(cfg.noobj_scale)
        ignore_threshold = float(cfg.ignore_threshold)
        reg_scale = float(cfg.reg_scale)
        nloss = len(self.anchor_groups)

        def _forward(outs, gt, anchor_groups):
            res = {k: jnp.zeros((), jnp.float32) for k in
                   ("xy", "wh", "conf", "cls", "obj", "all", "iou", "giou")}
            totals = []
            for out, anchors in zip(outs, anchor_groups):
                ret, total, gt = yolo_loss_scale_forward(
                    out, gt, anchors, obj_scale, noobj_scale, ignore_threshold,
                    reg_scale, num_cores, cap_rows, vmem_limit)
                for k, v in ret.items():
                    res[k] = res[k] + v / nloss
                totals.append(total)
            total_sum = jnp.stack(totals).sum()
            not_match = jnp.sum((gt[:, -1] == 0).astype(jnp.int32))
            return res, total_sum, not_match

        # one program per (shapes, nGts) signature: both scales + epilogue + not_match count
        self._forward_jit = jax.jit(_forward)

    def forward(self, outs, gt=None, size=None, infer=False):
        # training path only (infer=False), matching LossAPI.forward else-branch
        match = jnp.zeros((gt.shape[0], 1), dtype=jnp.float32)
        gt_aug = jnp.concatenate([jnp.asarray(gt, dtype=jnp.float32), match], axis=-1)

        res_dev, total_sum, not_match_dev = self._forward_jit(
            tuple(outs), gt_aug, self.anchor_groups)

        # single host transfer for the scalar reporting dict + not_match counter
        res_host, not_match = jax.device_get((res_dev, not_match_dev))
        res = {k: float(v) for k, v in res_host.items()}
        not_match = int(not_match)
        if not_match > 0:
            self.not_match += not_match
        return res, total_sum

    def reset_notmatch(self):
        self.not_match = 0


if __name__ == "__main__":
    key = jax.random.PRNGKey(0)
    cfg = Cfg()

    nB = 2
    nA = 3                      # anchors per scale (cls_num = 0 -> channels = nA*5 = 15)
    grid_sizes = [(16, 16), (8, 8)]

    outs = []
    for (h, w) in grid_sizes:
        key, sub = jax.random.split(key)
        outs.append(0.5 * jax.random.normal(sub, (nB, nA * 5, h, w), dtype=jnp.float32))

    # ground truth: [batch_idx, cx, cy, w, h], normalized coords
    nGts = 4
    key, sub = jax.random.split(key)
    boxes = jax.random.uniform(sub, (nGts, 4), minval=0.1, maxval=0.85, dtype=jnp.float32)
    batch_idx = jnp.array([0.0, 0.0, 1.0, 1.0], dtype=jnp.float32).reshape(-1, 1)
    gt = jnp.concatenate([batch_idx, boxes], axis=-1)

    loss_api = LossAPI(cfg, "yolo")
    res, total = loss_api.forward(outs, gt=gt, size=(128, 128))
    jax.block_until_ready(total)
    print("KERNEL_OK")
</pallas_src>

<mosaic_0001>
module attributes {stable_mosaic.version = 11 : i64} {
  func.func @kernel(%arg0: i32, %arg1: i32, %arg2: memref<2x8x128xf32, #tpu.memory_space<vmem>>, %arg3: memref<2x8x128xf32, #tpu.memory_space<vmem>>, %arg4: memref<2x8x128xf32, #tpu.memory_space<vmem>>, %arg5: memref<2x8x128xf32, #tpu.memory_space<vmem>>, %arg6: memref<2x8x128xf32, #tpu.memory_space<vmem>>, %arg7: memref<2x8x128xf32, #tpu.memory_space<vmem>>, %arg8: memref<2x8x128xf32, #tpu.memory_space<vmem>>, %arg9: memref<2x8x128xf32, #tpu.memory_space<vmem>>, %arg10: memref<2x8x128xf32, #tpu.memory_space<vmem>>, %arg11: memref<2x8x128xf32, #tpu.memory_space<vmem>>, %arg12: memref<8x8x128xf32, #tpu.memory_space<vmem>>) attributes {dimension_semantics = [#tpu.dimension_semantics<parallel>, #tpu.dimension_semantics<arbitrary>], iteration_bounds = array<i64: 1, 1>, scalar_prefetch = 0 : i64, scratch_operands = 0 : i64, tpu.core_type = #tpu.core_type<tc>, window_params = [{transform_indices = @transform_0, window_bounds = array<i64: 2, 8, 128>}, {transform_indices = @transform_1, window_bounds = array<i64: 2, 8, 128>}, {transform_indices = @transform_2, window_bounds = array<i64: 2, 8, 128>}, {transform_indices = @transform_3, window_bounds = array<i64: 2, 8, 128>}, {transform_indices = @transform_4, window_bounds = array<i64: 2, 8, 128>}, {transform_indices = @transform_5, window_bounds = array<i64: 2, 8, 128>}, {transform_indices = @transform_6, window_bounds = array<i64: 2, 8, 128>}, {transform_indices = @transform_7, window_bounds = array<i64: 2, 8, 128>}, {transform_indices = @transform_8, window_bounds = array<i64: 2, 8, 128>}, {transform_indices = @transform_9, window_bounds = array<i64: 2, 8, 128>}, {transform_indices = @transform_10, window_bounds = array<i64: 8, 8, 128>}]} {
    %c0_i32 = arith.constant 0 : i32
    %0 = arith.cmpi eq, %arg1, %c0_i32 : i32
    %1 = arith.extui %0 : i1 to i32
    %c0_i32_0 = arith.constant 0 : i32
    %2 = arith.cmpi ne, %1, %c0_i32_0 : i32
    scf.if %2 {
      %cst_114 = arith.constant 0.000000e+00 : f32
      %238 = vector.broadcast %cst_114 : f32 to vector<8x8x128xf32>
      %c0_115 = arith.constant 0 : index
      %c0_116 = arith.constant 0 : index
      %c0_117 = arith.constant 0 : index
      %239 = vector.load %arg12[%c0_115, %c0_116, %c0_117] : memref<8x8x128xf32, #tpu.memory_space<vmem>>, vector<8x8x128xf32>
      tpu.vector_store %arg12[%c0_115, %c0_116, %c0_117], %238 {strides = array<i32>} : memref<8x8x128xf32, #tpu.memory_space<vmem>>, vector<8x8x128xf32>,
    } else {
    }
    %cst = arith.constant 0.000000e+00 : f32
    %3 = vector.broadcast %cst : f32 to vector<8x128xf32>
    %c0_i32_1 = arith.constant 0 : i32
    %4 = arith.index_cast %c0_i32_1 : i32 to index
    %c0 = arith.constant 0 : index
    %c0_2 = arith.constant 0 : index
    %5 = vector.load %arg2[%4, %c0, %c0_2] : memref<2x8x128xf32, #tpu.memory_space<vmem>>, vector<1x8x128xf32>
    %6 = vector.shape_cast %5 : vector<1x8x128xf32> to vector<8x128xf32>
    %7 = arith.index_cast %c0_i32_1 : i32 to index
    %c0_3 = arith.constant 0 : index
    %c0_4 = arith.constant 0 : index
    %8 = vector.load %arg3[%7, %c0_3, %c0_4] : memref<2x8x128xf32, #tpu.memory_space<vmem>>, vector<1x8x128xf32>
    %9 = vector.shape_cast %8 : vector<1x8x128xf32> to vector<8x128xf32>
    %10 = arith.index_cast %c0_i32_1 : i32 to index
    %c0_5 = arith.constant 0 : index
    %c0_6 = arith.constant 0 : index
    %11 = vector.load %arg4[%10, %c0_5, %c0_6] : memref<2x8x128xf32, #tpu.memory_space<vmem>>, vector<1x8x128xf32>
    %12 = vector.shape_cast %11 : vector<1x8x128xf32> to vector<8x128xf32>
    %13 = arith.index_cast %c0_i32_1 : i32 to index
    %c0_7 = arith.constant 0 : index
    %c0_8 = arith.constant 0 : index
    %14 = vector.load %arg5[%13, %c0_7, %c0_8] : memref<2x8x128xf32, #tpu.memory_space<vmem>>, vector<1x8x128xf32>
    %15 = vector.shape_cast %14 : vector<1x8x128xf32> to vector<8x128xf32>
    %16 = arith.index_cast %c0_i32_1 : i32 to index
    %c0_9 = arith.constant 0 : index
    %c0_10 = arith.constant 0 : index
    %17 = vector.load %arg6[%16, %c0_9, %c0_10] : memref<2x8x128xf32, #tpu.memory_space<vmem>>, vector<1x8x128xf32>
    %18 = vector.shape_cast %17 : vector<1x8x128xf32> to vector<8x128xf32>
    %19 = arith.index_cast %c0_i32_1 : i32 to index
    %c0_11 = arith.constant 0 : index
    %c0_12 = arith.constant 0 : index
    %20 = vector.load %arg7[%19, %c0_11, %c0_12] : memref<2x8x128xf32, #tpu.memory_space<vmem>>, vector<1x8x128xf32>
    %21 = vector.shape_cast %20 : vector<1x8x128xf32> to vector<8x128xf32>
    %22 = arith.index_cast %c0_i32_1 : i32 to index
    %c0_13 = arith.constant 0 : index
    %c0_14 = arith.constant 0 : index
    %23 = vector.load %arg8[%22, %c0_13, %c0_14] : memref<2x8x128xf32, #tpu.memory_space<vmem>>, vector<1x8x128xf32>
    %24 = vector.shape_cast %23 : vector<1x8x128xf32> to vector<8x128xf32>
    %25 = arith.index_cast %c0_i32_1 : i32 to index
    %c0_15 = arith.constant 0 : index
    %c0_16 = arith.constant 0 : index
    %26 = vector.load %arg9[%25, %c0_15, %c0_16] : memref<2x8x128xf32, #tpu.memory_space<vmem>>, vector<1x8x128xf32>
    %27 = vector.shape_cast %26 : vector<1x8x128xf32> to vector<8x128xf32>
    %28 = arith.index_cast %c0_i32_1 : i32 to index
    %c0_17 = arith.constant 0 : index
    %c0_18 = arith.constant 0 : index
    %29 = vector.load %arg10[%28, %c0_17, %c0_18] : memref<2x8x128xf32, #tpu.memory_space<vmem>>, vector<1x8x128xf32>
    %30 = vector.shape_cast %29 : vector<1x8x128xf32> to vector<8x128xf32>
    %31 = arith.index_cast %c0_i32_1 : i32 to index
    %c0_19 = arith.constant 0 : index
    %c0_20 = arith.constant 0 : index
    %32 = vector.load %arg11[%31, %c0_19, %c0_20] : memref<2x8x128xf32, #tpu.memory_space<vmem>>, vector<1x8x128xf32>
    %33 = vector.shape_cast %32 : vector<1x8x128xf32> to vector<8x128xf32>
    %cst_21 = arith.constant 0.000000e+00 : f32
    %34 = vector.broadcast %cst_21 : f32 to vector<8x128xf32>
    %35 = arith.maximumf %21, %34 : vector<8x128xf32>
    %36 = math.absf %21 : vector<8x128xf32>
    %37 = arith.subf %36, %35 : vector<8x128xf32>
    %cst_22 = arith.constant 5.000000e-01 : f32
    %38 = vector.broadcast %cst_22 : f32 to vector<8x128xf32>
    %39 = arith.mulf %38, %6 : vector<8x128xf32>
    %40 = math.tanh %39 : vector<8x128xf32>
    %cst_23 = arith.constant 5.000000e-01 : f32
    %41 = vector.broadcast %cst_23 : f32 to vector<8x128xf32>
    %42 = arith.mulf %41, %40 : vector<8x128xf32>
    %cst_24 = arith.constant 5.000000e-01 : f32
    %43 = vector.broadcast %cst_24 : f32 to vector<8x128xf32>
    %44 = arith.addf %42, %43 : vector<8x128xf32>
    %cst_25 = arith.constant 5.000000e-01 : f32
    %45 = vector.broadcast %cst_25 : f32 to vector<8x128xf32>
    %46 = arith.mulf %45, %9 : vector<8x128xf32>
    %47 = math.tanh %46 : vector<8x128xf32>
    %cst_26 = arith.constant 5.000000e-01 : f32
    %48 = vector.broadcast %cst_26 : f32 to vector<8x128xf32>
    %49 = arith.mulf %48, %47 : vector<8x128xf32>
    %cst_27 = arith.constant 5.000000e-01 : f32
    %50 = vector.broadcast %cst_27 : f32 to vector<8x128xf32>
    %51 = arith.addf %49, %50 : vector<8x128xf32>
    %cst_28 = arith.constant -5.000000e+00 : f32
    %cst_29 = arith.constant 5.000000e+00 : f32
    %52 = vector.broadcast %cst_28 : f32 to vector<8x128xf32>
    %53 = arith.maximumf %52, %12 : vector<8x128xf32>
    %54 = vector.broadcast %cst_29 : f32 to vector<8x128xf32>
    %55 = arith.minimumf %54, %53 : vector<8x128xf32>
    %cst_30 = arith.constant -5.000000e+00 : f32
    %cst_31 = arith.constant 5.000000e+00 : f32
    %56 = vector.broadcast %cst_30 : f32 to vector<8x128xf32>
    %57 = arith.maximumf %56, %15 : vector<8x128xf32>
    %58 = vector.broadcast %cst_31 : f32 to vector<8x128xf32>
    %59 = arith.minimumf %58, %57 : vector<8x128xf32>
    %60 = math.absf %18 : vector<8x128xf32>
    %cst_32 = arith.constant 0.000000e+00 : f32
    %61 = vector.broadcast %cst_32 : f32 to vector<8x128xf32>
    %62 = arith.subf %61, %60 : vector<8x128xf32>
    %63 = math.exp %62 : vector<8x128xf32>
    %cst_33 = arith.constant 1.000000e+00 : f32
    %64 = vector.broadcast %cst_33 : f32 to vector<8x128xf32>
    %65 = arith.addf %64, %63 : vector<8x128xf32>
    %66 = math.log %65 : vector<8x128xf32>
    %cst_34 = arith.constant 0.000000e+00 : f32
    %67 = vector.broadcast %cst_34 : f32 to vector<8x128xf32>
    %68 = arith.maximumf %18, %67 : vector<8x128xf32>
    %69 = arith.addf %66, %68 : vector<8x128xf32>
    %cst_35 = arith.constant 1.000000e+02 : f32
    %70 = vector.broadcast %cst_35 : f32 to vector<8x128xf32>
    %71 = arith.minimumf %69, %70 : vector<8x128xf32>
    %72 = arith.subf %69, %18 : vector<8x128xf32>
    %cst_36 = arith.constant 1.000000e+02 : f32
    %73 = vector.broadcast %cst_36 : f32 to vector<8x128xf32>
    %74 = arith.minimumf %72, %73 : vector<8x128xf32>
    %75 = arith.subf %44, %24 : vector<8x128xf32>
    %76 = arith.subf %51, %27 : vector<8x128xf32>
    %77 = arith.subf %55, %30 : vector<8x128xf32>
    %78 = arith.subf %59, %33 : vector<8x128xf32>
    %79 = arith.mulf %75, %75 : vector<8x128xf32>
    %80 = arith.mulf %35, %79 : vector<8x128xf32>
    %81 = arith.addf %3, %80 : vector<8x128xf32>
    %82 = arith.mulf %76, %76 : vector<8x128xf32>
    %83 = arith.mulf %35, %82 : vector<8x128xf32>
    %84 = arith.addf %3, %83 : vector<8x128xf32>
    %85 = arith.mulf %77, %77 : vector<8x128xf32>
    %86 = arith.mulf %35, %85 : vector<8x128xf32>
    %87 = arith.addf %3, %86 : vector<8x128xf32>
    %88 = arith.mulf %78, %78 : vector<8x128xf32>
    %89 = arith.mulf %35, %88 : vector<8x128xf32>
    %90 = arith.addf %3, %89 : vector<8x128xf32>
    %91 = arith.mulf %35, %74 : vector<8x128xf32>
    %92 = arith.addf %3, %91 : vector<8x128xf32>
    %93 = arith.mulf %37, %71 : vector<8x128xf32>
    %94 = arith.addf %3, %93 : vector<8x128xf32>
    %95 = arith.addf %3, %35 : vector<8x128xf32>
    %96 = arith.addf %3, %37 : vector<8x128xf32>
    %c1_i32 = arith.constant 1 : i32
    %97 = arith.index_cast %c1_i32 : i32 to index
    %c0_37 = arith.constant 0 : index
    %c0_38 = arith.constant 0 : index
    %98 = vector.load %arg2[%97, %c0_37, %c0_38] : memref<2x8x128xf32, #tpu.memory_space<vmem>>, vector<1x8x128xf32>
    %99 = vector.shape_cast %98 : vector<1x8x128xf32> to vector<8x128xf32>
    %100 = arith.index_cast %c1_i32 : i32 to index
    %c0_39 = arith.constant 0 : index
    %c0_40 = arith.constant 0 : index
    %101 = vector.load %arg3[%100, %c0_39, %c0_40] : memref<2x8x128xf32, #tpu.memory_space<vmem>>, vector<1x8x128xf32>
    %102 = vector.shape_cast %101 : vector<1x8x128xf32> to vector<8x128xf32>
    %103 = arith.index_cast %c1_i32 : i32 to index
    %c0_41 = arith.constant 0 : index
    %c0_42 = arith.constant 0 : index
    %104 = vector.load %arg4[%103, %c0_41, %c0_42] : memref<2x8x128xf32, #tpu.memory_space<vmem>>, vector<1x8x128xf32>
    %105 = vector.shape_cast %104 : vector<1x8x128xf32> to vector<8x128xf32>
    %106 = arith.index_cast %c1_i32 : i32 to index
    %c0_43 = arith.constant 0 : index
    %c0_44 = arith.constant 0 : index
    %107 = vector.load %arg5[%106, %c0_43, %c0_44] : memref<2x8x128xf32, #tpu.memory_space<vmem>>, vector<1x8x128xf32>
    %108 = vector.shape_cast %107 : vector<1x8x128xf32> to vector<8x128xf32>
    %109 = arith.index_cast %c1_i32 : i32 to index
    %c0_45 = arith.constant 0 : index
    %c0_46 = arith.constant 0 : index
    %110 = vector.load %arg6[%109, %c0_45, %c0_46] : memref<2x8x128xf32, #tpu.memory_space<vmem>>, vector<1x8x128xf32>
    %111 = vector.shape_cast %110 : vector<1x8x128xf32> to vector<8x128xf32>
    %112 = arith.index_cast %c1_i32 : i32 to index
    %c0_47 = arith.constant 0 : index
    %c0_48 = arith.constant 0 : index
    %113 = vector.load %arg7[%112, %c0_47, %c0_48] : memref<2x8x128xf32, #tpu.memory_space<vmem>>, vector<1x8x128xf32>
    %114 = vector.shape_cast %113 : vector<1x8x128xf32> to vector<8x128xf32>
    %115 = arith.index_cast %c1_i32 : i32 to index
    %c0_49 = arith.constant 0 : index
    %c0_50 = arith.constant 0 : index
    %116 = vector.load %arg8[%115, %c0_49, %c0_50] : memref<2x8x128xf32, #tpu.memory_space<vmem>>, vector<1x8x128xf32>
    %117 = vector.shape_cast %116 : vector<1x8x128xf32> to vector<8x128xf32>
    %118 = arith.index_cast %c1_i32 : i32 to index
    %c0_51 = arith.constant 0 : index
    %c0_52 = arith.constant 0 : index
    %119 = vector.load %arg9[%118, %c0_51, %c0_52] : memref<2x8x128xf32, #tpu.memory_space<vmem>>, vector<1x8x128xf32>
    %120 = vector.shape_cast %119 : vector<1x8x128xf32> to vector<8x128xf32>
    %121 = arith.index_cast %c1_i32 : i32 to index
    %c0_53 = arith.constant 0 : index
    %c0_54 = arith.constant 0 : index
    %122 = vector.load %arg10[%121, %c0_53, %c0_54] : memref<2x8x128xf32, #tpu.memory_space<vmem>>, vector<1x8x128xf32>
    %123 = vector.shape_cast %122 : vector<1x8x128xf32> to vector<8x128xf32>
    %124 = arith.index_cast %c1_i32 : i32 to index
    %c0_55 = arith.constant 0 : index
    %c0_56 = arith.constant 0 : index
    %125 = vector.load %arg11[%124, %c0_55, %c0_56] : memref<2x8x128xf32, #tpu.memory_space<vmem>>, vector<1x8x128xf32>
    %126 = vector.shape_cast %125 : vector<1x8x128xf32> to vector<8x128xf32>
    %cst_57 = arith.constant 0.000000e+00 : f32
    %127 = vector.broadcast %cst_57 : f32 to vector<8x128xf32>
    %128 = arith.maximumf %114, %127 : vector<8x128xf32>
    %129 = math.absf %114 : vector<8x128xf32>
    %130 = arith.subf %129, %128 : vector<8x128xf32>
    %cst_58 = arith.constant 5.000000e-01 : f32
    %131 = vector.broadcast %cst_58 : f32 to vector<8x128xf32>
    %132 = arith.mulf %131, %99 : vector<8x128xf32>
    %133 = math.tanh %132 : vector<8x128xf32>
    %cst_59 = arith.constant 5.000000e-01 : f32
    %134 = vector.broadcast %cst_59 : f32 to vector<8x128xf32>
    %135 = arith.mulf %134, %133 : vector<8x128xf32>
    %cst_60 = arith.constant 5.000000e-01 : f32
    %136 = vector.broadcast %cst_60 : f32 to vector<8x128xf32>
    %137 = arith.addf %135, %136 : vector<8x128xf32>
    %cst_61 = arith.constant 5.000000e-01 : f32
    %138 = vector.broadcast %cst_61 : f32 to vector<8x128xf32>
    %139 = arith.mulf %138, %102 : vector<8x128xf32>
    %140 = math.tanh %139 : vector<8x128xf32>
    %cst_62 = arith.constant 5.000000e-01 : f32
    %141 = vector.broadcast %cst_62 : f32 to vector<8x128xf32>
    %142 = arith.mulf %141, %140 : vector<8x128xf32>
    %cst_63 = arith.constant 5.000000e-01 : f32
    %143 = vector.broadcast %cst_63 : f32 to vector<8x128xf32>
    %144 = arith.addf %142, %143 : vector<8x128xf32>
    %cst_64 = arith.constant -5.000000e+00 : f32
    %cst_65 = arith.constant 5.000000e+00 : f32
    %145 = vector.broadcast %cst_64 : f32 to vector<8x128xf32>
    %146 = arith.maximumf %145, %105 : vector<8x128xf32>
    %147 = vector.broadcast %cst_65 : f32 to vector<8x128xf32>
    %148 = arith.minimumf %147, %146 : vector<8x128xf32>
    %cst_66 = arith.constant -5.000000e+00 : f32
    %cst_67 = arith.constant 5.000000e+00 : f32
    %149 = vector.broadcast %cst_66 : f32 to vector<8x128xf32>
    %150 = arith.maximumf %149, %108 : vector<8x128xf32>
    %151 = vector.broadcast %cst_67 : f32 to vector<8x128xf32>
    %152 = arith.minimumf %151, %150 : vector<8x128xf32>
    %153 = math.absf %111 : vector<8x128xf32>
    %cst_68 = arith.constant 0.000000e+00 : f32
    %154 = vector.broadcast %cst_68 : f32 to vector<8x128xf32>
    %155 = arith.subf %154, %153 : vector<8x128xf32>
    %156 = math.exp %155 : vector<8x128xf32>
    %cst_69 = arith.constant 1.000000e+00 : f32
    %157 = vector.broadcast %cst_69 : f32 to vector<8x128xf32>
    %158 = arith.addf %157, %156 : vector<8x128xf32>
    %159 = math.log %158 : vector<8x128xf32>
    %cst_70 = arith.constant 0.000000e+00 : f32
    %160 = vector.broadcast %cst_70 : f32 to vector<8x128xf32>
    %161 = arith.maximumf %111, %160 : vector<8x128xf32>
    %162 = arith.addf %159, %161 : vector<8x128xf32>
    %cst_71 = arith.constant 1.000000e+02 : f32
    %163 = vector.broadcast %cst_71 : f32 to vector<8x128xf32>
    %164 = arith.minimumf %162, %163 : vector<8x128xf32>
    %165 = arith.subf %162, %111 : vector<8x128xf32>
    %cst_72 = arith.constant 1.000000e+02 : f32
    %166 = vector.broadcast %cst_72 : f32 to vector<8x128xf32>
    %167 = arith.minimumf %165, %166 : vector<8x128xf32>
    %168 = arith.subf %137, %117 : vector<8x128xf32>
    %169 = arith.subf %144, %120 : vector<8x128xf32>
    %170 = arith.subf %148, %123 : vector<8x128xf32>
    %171 = arith.subf %152, %126 : vector<8x128xf32>
    %172 = arith.mulf %168, %168 : vector<8x128xf32>
    %173 = arith.mulf %128, %172 : vector<8x128xf32>
    %174 = arith.addf %81, %173 : vector<8x128xf32>
    %175 = arith.mulf %169, %169 : vector<8x128xf32>
    %176 = arith.mulf %128, %175 : vector<8x128xf32>
    %177 = arith.addf %84, %176 : vector<8x128xf32>
    %178 = arith.mulf %170, %170 : vector<8x128xf32>
    %179 = arith.mulf %128, %178 : vector<8x128xf32>
    %180 = arith.addf %87, %179 : vector<8x128xf32>
    %181 = arith.mulf %171, %171 : vector<8x128xf32>
    %182 = arith.mulf %128, %181 : vector<8x128xf32>
    %183 = arith.addf %90, %182 : vector<8x128xf32>
    %184 = arith.mulf %128, %167 : vector<8x128xf32>
    %185 = arith.addf %92, %184 : vector<8x128xf32>
    %186 = arith.mulf %130, %164 : vector<8x128xf32>
    %187 = arith.addf %94, %186 : vector<8x128xf32>
    %188 = arith.addf %95, %128 : vector<8x128xf32>
    %189 = arith.addf %96, %130 : vector<8x128xf32>
    %c2_i32 = arith.constant 2 : i32
    %c0_73 = arith.constant 0 : index
    %c0_74 = arith.constant 0 : index
    %c0_75 = arith.constant 0 : index
    %190 = vector.load %arg12[%c0_73, %c0_74, %c0_75] : memref<8x8x128xf32, #tpu.memory_space<vmem>>, vector<1x8x128xf32>
    %191 = vector.shape_cast %190 : vector<1x8x128xf32> to vector<8x128xf32>
    %192 = arith.addf %191, %174 : vector<8x128xf32>
    %c0_76 = arith.constant 0 : index
    %c0_77 = arith.constant 0 : index
    %c0_78 = arith.constant 0 : index
    %193 = vector.load %arg12[%c0_76, %c0_77, %c0_78] : memref<8x8x128xf32, #tpu.memory_space<vmem>>, vector<1x8x128xf32>
    %194 = vector.shape_cast %193 : vector<1x8x128xf32> to vector<8x128xf32>
    %195 = vector.shape_cast %192 : vector<8x128xf32> to vector<1x8x128xf32>
    tpu.vector_store %arg12[%c0_76, %c0_77, %c0_78], %195 {strides = array<i32>} : memref<8x8x128xf32, #tpu.memory_space<vmem>>, vector<1x8x128xf32>,
    %c1 = arith.constant 1 : index
    %c0_79 = arith.constant 0 : index
    %c0_80 = arith.constant 0 : index
    %196 = vector.load %arg12[%c1, %c0_79, %c0_80] : memref<8x8x128xf32, #tpu.memory_space<vmem>>, vector<1x8x128xf32>
    %197 = vector.shape_cast %196 : vector<1x8x128xf32> to vector<8x128xf32>
    %198 = arith.addf %197, %177 : vector<8x128xf32>
    %c1_81 = arith.constant 1 : index
    %c0_82 = arith.constant 0 : index
    %c0_83 = arith.constant 0 : index
    %199 = vector.load %arg12[%c1_81, %c0_82, %c0_83] : memref<8x8x128xf32, #tpu.memory_space<vmem>>, vector<1x8x128xf32>
    %200 = vector.shape_cast %199 : vector<1x8x128xf32> to vector<8x128xf32>
    %201 = vector.shape_cast %198 : vector<8x128xf32> to vector<1x8x128xf32>
    tpu.vector_store %arg12[%c1_81, %c0_82, %c0_83], %201 {strides = array<i32>} : memref<8x8x128xf32, #tpu.memory_space<vmem>>, vector<1x8x128xf32>,
    %c2 = arith.constant 2 : index
    %c0_84 = arith.constant 0 : index
    %c0_85 = arith.constant 0 : index
    %202 = vector.load %arg12[%c2, %c0_84, %c0_85] : memref<8x8x128xf32, #tpu.memory_space<vmem>>, vector<1x8x128xf32>
    %203 = vector.shape_cast %202 : vector<1x8x128xf32> to vector<8x128xf32>
    %204 = arith.addf %203, %180 : vector<8x128xf32>
    %c2_86 = arith.constant 2 : index
    %c0_87 = arith.constant 0 : index
    %c0_88 = arith.constant 0 : index
    %205 = vector.load %arg12[%c2_86, %c0_87, %c0_88] : memref<8x8x128xf32, #tpu.memory_space<vmem>>, vector<1x8x128xf32>
    %206 = vector.shape_cast %205 : vector<1x8x128xf32> to vector<8x128xf32>
    %207 = vector.shape_cast %204 : vector<8x128xf32> to vector<1x8x128xf32>
    tpu.vector_store %arg12[%c2_86, %c0_87, %c0_88], %207 {strides = array<i32>} : memref<8x8x128xf32, #tpu.memory_space<vmem>>, vector<1x8x128xf32>,
    %c3 = arith.constant 3 : index
    %c0_89 = arith.constant 0 : index
    %c0_90 = arith.constant 0 : index
    %208 = vector.load %arg12[%c3, %c0_89, %c0_90] : memref<8x8x128xf32, #tpu.memory_space<vmem>>, vector<1x8x128xf32>
    %209 = vector.shape_cast %208 : vector<1x8x128xf32> to vector<8x128xf32>
    %210 = arith.addf %209, %183 : vector<8x128xf32>
    %c3_91 = arith.constant 3 : index
    %c0_92 = arith.constant 0 : index
    %c0_93 = arith.constant 0 : index
    %211 = vector.load %arg12[%c3_91, %c0_92, %c0_93] : memref<8x8x128xf32, #tpu.memory_space<vmem>>, vector<1x8x128xf32>
    %212 = vector.shape_cast %211 : vector<1x8x128xf32> to vector<8x128xf32>
    %213 = vector.shape_cast %210 : vector<8x128xf32> to vector<1x8x128xf32>
    tpu.vector_store %arg12[%c3_91, %c0_92, %c0_93], %213 {strides = array<i32>} : memref<8x8x128xf32, #tpu.memory_space<vmem>>, vector<1x8x128xf32>,
    %c4 = arith.constant 4 : index
    %c0_94 = arith.constant 0 : index
    %c0_95 = arith.constant 0 : index
    %214 = vector.load %arg12[%c4, %c0_94, %c0_95] : memref<8x8x128xf32, #tpu.memory_space<vmem>>, vector<1x8x128xf32>
    %215 = vector.shape_cast %214 : vector<1x8x128xf32> to vector<8x128xf32>
    %216 = arith.addf %215, %185 : vector<8x128xf32>
    %c4_96 = arith.constant 4 : index
    %c0_97 = arith.constant 0 : index
    %c0_98 = arith.constant 0 : index
    %217 = vector.load %arg12[%c4_96, %c0_97, %c0_98] : memref<8x8x128xf32, #tpu.memory_space<vmem>>, vector<1x8x128xf32>
    %218 = vector.shape_cast %217 : vector<1x8x128xf32> to vector<8x128xf32>
    %219 = vector.shape_cast %216 : vector<8x128xf32> to vector<1x8x128xf32>
    tpu.vector_store %arg12[%c4_96, %c0_97, %c0_98], %219 {strides = array<i32>} : memref<8x8x128xf32, #tpu.memory_space<vmem>>, vector<1x8x128xf32>,
    %c5 = arith.constant 5 : index
    %c0_99 = arith.constant 0 : index
    %c0_100 = arith.constant 0 : index
    %220 = vector.load %arg12[%c5, %c0_99, %c0_100] : memref<8x8x128xf32, #tpu.memory_space<vmem>>, vector<1x8x128xf32>
    %221 = vector.shape_cast %220 : vector<1x8x128xf32> to vector<8x128xf32>
    %222 = arith.addf %221, %187 : vector<8x128xf32>
    %c5_101 = arith.constant 5 : index
    %c0_102 = arith.constant 0 : index
    %c0_103 = arith.constant 0 : index
    %223 = vector.load %arg12[%c5_101, %c0_102, %c0_103] : memref<8x8x128xf32, #tpu.memory_space<vmem>>, vector<1x8x128xf32>
    %224 = vector.shape_cast %223 : vector<1x8x128xf32> to vector<8x128xf32>
    %225 = vector.shape_cast %222 : vector<8x128xf32> to vector<1x8x128xf32>
    tpu.vector_store %arg12[%c5_101, %c0_102, %c0_103], %225 {strides = array<i32>} : memref<8x8x128xf32, #tpu.memory_space<vmem>>, vector<1x8x128xf32>,
    %c6 = arith.constant 6 : index
    %c0_104 = arith.constant 0 : index
    %c0_105 = arith.constant 0 : index
    %226 = vector.load %arg12[%c6, %c0_104, %c0_105] : memref<8x8x128xf32, #tpu.memory_space<vmem>>, vector<1x8x128xf32>
    %227 = vector.shape_cast %226 : vector<1x8x128xf32> to vector<8x128xf32>
    %228 = arith.addf %227, %188 : vector<8x128xf32>
    %c6_106 = arith.constant 6 : index
    %c0_107 = arith.constant 0 : index
    %c0_108 = arith.constant 0 : index
    %229 = vector.load %arg12[%c6_106, %c0_107, %c0_108] : memref<8x8x128xf32, #tpu.memory_space<vmem>>, vector<1x8x128xf32>
    %230 = vector.shape_cast %229 : vector<1x8x128xf32> to vector<8x128xf32>
    %231 = vector.shape_cast %228 : vector<8x128xf32> to vector<1x8x128xf32>
    tpu.vector_store %arg12[%c6_106, %c0_107, %c0_108], %231 {strides = array<i32>} : memref<8x8x128xf32, #tpu.memory_space<vmem>>, vector<1x8x128xf32>,
    %c7 = arith.constant 7 : index
    %c0_109 = arith.constant 0 : index
    %c0_110 = arith.constant 0 : index
    %232 = vector.load %arg12[%c7, %c0_109, %c0_110] : memref<8x8x128xf32, #tpu.memory_space<vmem>>, vector<1x8x128xf32>
    %233 = vector.shape_cast %232 : vector<1x8x128xf32> to vector<8x128xf32>
    %234 = arith.addf %233, %189 : vector<8x128xf32>
    %c7_111 = arith.constant 7 : index
    %c0_112 = arith.constant 0 : index
    %c0_113 = arith.constant 0 : index
    %235 = vector.load %arg12[%c7_111, %c0_112, %c0_113] : memref<8x8x128xf32, #tpu.memory_space<vmem>>, vector<1x8x128xf32>
    %236 = vector.shape_cast %235 : vector<1x8x128xf32> to vector<8x128xf32>
    %237 = vector.shape_cast %234 : vector<8x128xf32> to vector<1x8x128xf32>
    tpu.vector_store %arg12[%c7_111, %c0_112, %c0_113], %237 {strides = array<i32>} : memref<8x8x128xf32, #tpu.memory_space<vmem>>, vector<1x8x128xf32>,
    return
  }
  func.func @transform_0(%arg0: i32, %arg1: i32) -> (i32, i32, i32) {
    %c1_i32 = arith.constant 1 : i32
    %0 = arith.muli %arg0, %c1_i32 : i32
    %1 = arith.addi %0, %arg1 : i32
    %c0_i32 = arith.constant 0 : i32
    %c0_i32_0 = arith.constant 0 : i32
    %c0_i32_1 = arith.constant 0 : i32
    return %1, %c0_i32, %c0_i32_0 : i32, i32, i32
  }
  func.func @transform_1(%arg0: i32, %arg1: i32) -> (i32, i32, i32) {
    %c1_i32 = arith.constant 1 : i32
    %0 = arith.muli %arg0, %c1_i32 : i32
    %1 = arith.addi %0, %arg1 : i32
    %c0_i32 = arith.constant 0 : i32
    %c0_i32_0 = arith.constant 0 : i32
    %c0_i32_1 = arith.constant 0 : i32
    return %1, %c0_i32, %c0_i32_0 : i32, i32, i32
  }
  func.func @transform_2(%arg0: i32, %arg1: i32) -> (i32, i32, i32) {
    %c1_i32 = arith.constant 1 : i32
    %0 = arith.muli %arg0, %c1_i32 : i32
    %1 = arith.addi %0, %arg1 : i32
    %c0_i32 = arith.constant 0 : i32
    %c0_i32_0 = arith.constant 0 : i32
    %c0_i32_1 = arith.constant 0 : i32
    return %1, %c0_i32, %c0_i32_0 : i32, i32, i32
  }
  func.func @transform_3(%arg0: i32, %arg1: i32) -> (i32, i32, i32) {
    %c1_i32 = arith.constant 1 : i32
    %0 = arith.muli %arg0, %c1_i32 : i32
    %1 = arith.addi %0, %arg1 : i32
    %c0_i32 = arith.constant 0 : i32
    %c0_i32_0 = arith.constant 0 : i32
    %c0_i32_1 = arith.constant 0 : i32
    return %1, %c0_i32, %c0_i32_0 : i32, i32, i32
  }
  func.func @transform_4(%arg0: i32, %arg1: i32) -> (i32, i32, i32) {
    %c1_i32 = arith.constant 1 : i32
    %0 = arith.muli %arg0, %c1_i32 : i32
    %1 = arith.addi %0, %arg1 : i32
    %c0_i32 = arith.constant 0 : i32
    %c0_i32_0 = arith.constant 0 : i32
    %c0_i32_1 = arith.constant 0 : i32
    return %1, %c0_i32, %c0_i32_0 : i32, i32, i32
  }
  func.func @transform_5(%arg0: i32, %arg1: i32) -> (i32, i32, i32) {
    %c1_i32 = arith.constant 1 : i32
    %0 = arith.muli %arg0, %c1_i32 : i32
    %1 = arith.addi %0, %arg1 : i32
    %c0_i32 = arith.constant 0 : i32
    %c0_i32_0 = arith.constant 0 : i32
    %c0_i32_1 = arith.constant 0 : i32
    return %1, %c0_i32, %c0_i32_0 : i32, i32, i32
  }
  func.func @transform_6(%arg0: i32, %arg1: i32) -> (i32, i32, i32) {
    %c1_i32 = arith.constant 1 : i32
    %0 = arith.muli %arg0, %c1_i32 : i32
    %1 = arith.addi %0, %arg1 : i32
    %c0_i32 = arith.constant 0 : i32
    %c0_i32_0 = arith.constant 0 : i32
    %c0_i32_1 = arith.constant 0 : i32
    return %1, %c0_i32, %c0_i32_0 : i32, i32, i32
  }
  func.func @transform_7(%arg0: i32, %arg1: i32) -> (i32, i32, i32) {
    %c1_i32 = arith.constant 1 : i32
    %0 = arith.muli %arg0, %c1_i32 : i32
    %1 = arith.addi %0, %arg1 : i32
    %c0_i32 = arith.constant 0 : i32
    %c0_i32_0 = arith.constant 0 : i32
    %c0_i32_1 = arith.constant 0 : i32
    return %1, %c0_i32, %c0_i32_0 : i32, i32, i32
  }
  func.func @transform_8(%arg0: i32, %arg1: i32) -> (i32, i32, i32) {
    %c1_i32 = arith.constant 1 : i32
    %0 = arith.muli %arg0, %c1_i32 : i32
    %1 = arith.addi %0, %arg1 : i32
    %c0_i32 = arith.constant 0 : i32
    %c0_i32_0 = arith.constant 0 : i32
    %c0_i32_1 = arith.constant 0 : i32
    return %1, %c0_i32, %c0_i32_0 : i32, i32, i32
  }
  func.func @transform_9(%arg0: i32, %arg1: i32) -> (i32, i32, i32) {
    %c1_i32 = arith.constant 1 : i32
    %0 = arith.muli %arg0, %c1_i32 : i32
    %1 = arith.addi %0, %arg1 : i32
    %c0_i32 = arith.constant 0 : i32
    %c0_i32_0 = arith.constant 0 : i32
    %c0_i32_1 = arith.constant 0 : i32
    return %1, %c0_i32, %c0_i32_0 : i32, i32, i32
  }
  func.func @transform_10(%arg0: i32, %arg1: i32) -> (i32, i32, i32) {
    %c0_i32 = arith.constant 0 : i32
    %c0_i32_0 = arith.constant 0 : i32
    %c0_i32_1 = arith.constant 0 : i32
    return %arg0, %c0_i32, %c0_i32_0 : i32, i32, i32
  }
}

module attributes {stable_mosaic.version = 11 : i64} {
  func.func @kernel(%arg0: i32, %arg1: i32, %arg2: memref<1x8x128xf32, #tpu.memory_space<vmem>>, %arg3: memref<1x8x128xf32, #tpu.memory_space<vmem>>, %arg4: memref<1x8x128xf32, #tpu.memory_space<vmem>>, %arg5: memref<1x8x128xf32, #tpu.memory_space<vmem>>, %arg6: memref<1x8x128xf32, #tpu.memory_space<vmem>>, %arg7: memref<1x8x128xf32, #tpu.memory_space<vmem>>, %arg8: memref<1x8x128xf32, #tpu.memory_space<vmem>>, %arg9: memref<1x8x128xf32, #tpu.memory_space<vmem>>, %arg10: memref<1x8x128xf32, #tpu.memory_space<vmem>>, %arg11: memref<1x8x128xf32, #tpu.memory_space<vmem>>, %arg12: memref<8x8x128xf32, #tpu.memory_space<vmem>>) attributes {dimension_semantics = [#tpu.dimension_semantics<parallel>, #tpu.dimension_semantics<arbitrary>], iteration_bounds = array<i64: 1, 1>, scalar_prefetch = 0 : i64, scratch_operands = 0 : i64, tpu.core_type = #tpu.core_type<tc>, window_params = [{transform_indices = @transform_0, window_bounds = array<i64: 1, 8, 128>}, {transform_indices = @transform_1, window_bounds = array<i64: 1, 8, 128>}, {transform_indices = @transform_2, window_bounds = array<i64: 1, 8, 128>}, {transform_indices = @transform_3, window_bounds = array<i64: 1, 8, 128>}, {transform_indices = @transform_4, window_bounds = array<i64: 1, 8, 128>}, {transform_indices = @transform_5, window_bounds = array<i64: 1, 8, 128>}, {transform_indices = @transform_6, window_bounds = array<i64: 1, 8, 128>}, {transform_indices = @transform_7, window_bounds = array<i64: 1, 8, 128>}, {transform_indices = @transform_8, window_bounds = array<i64: 1, 8, 128>}, {transform_indices = @transform_9, window_bounds = array<i64: 1, 8, 128>}, {transform_indices = @transform_10, window_bounds = array<i64: 8, 8, 128>}]} {
    %c0_i32 = arith.constant 0 : i32
    %0 = arith.cmpi eq, %arg1, %c0_i32 : i32
    %1 = arith.extui %0 : i1 to i32
    %c0_i32_0 = arith.constant 0 : i32
    %2 = arith.cmpi ne, %1, %c0_i32_0 : i32
    scf.if %2 {
      %cst_78 = arith.constant 0.000000e+00 : f32
      %145 = vector.broadcast %cst_78 : f32 to vector<8x8x128xf32>
      %c0_79 = arith.constant 0 : index
      %c0_80 = arith.constant 0 : index
      %c0_81 = arith.constant 0 : index
      %146 = vector.load %arg12[%c0_79, %c0_80, %c0_81] : memref<8x8x128xf32, #tpu.memory_space<vmem>>, vector<8x8x128xf32>
      tpu.vector_store %arg12[%c0_79, %c0_80, %c0_81], %145 {strides = array<i32>} : memref<8x8x128xf32, #tpu.memory_space<vmem>>, vector<8x8x128xf32>,
    } else {
    }
    %cst = arith.constant 0.000000e+00 : f32
    %3 = vector.broadcast %cst : f32 to vector<8x128xf32>
    %c0_i32_1 = arith.constant 0 : i32
    %4 = arith.index_cast %c0_i32_1 : i32 to index
    %c0 = arith.constant 0 : index
    %c0_2 = arith.constant 0 : index
    %5 = vector.load %arg2[%4, %c0, %c0_2] : memref<1x8x128xf32, #tpu.memory_space<vmem>>, vector<1x8x128xf32>
    %6 = vector.shape_cast %5 : vector<1x8x128xf32> to vector<8x128xf32>
    %7 = arith.index_cast %c0_i32_1 : i32 to index
    %c0_3 = arith.constant 0 : index
    %c0_4 = arith.constant 0 : index
    %8 = vector.load %arg3[%7, %c0_3, %c0_4] : memref<1x8x128xf32, #tpu.memory_space<vmem>>, vector<1x8x128xf32>
    %9 = vector.shape_cast %8 : vector<1x8x128xf32> to vector<8x128xf32>
    %10 = arith.index_cast %c0_i32_1 : i32 to index
    %c0_5 = arith.constant 0 : index
    %c0_6 = arith.constant 0 : index
    %11 = vector.load %arg4[%10, %c0_5, %c0_6] : memref<1x8x128xf32, #tpu.memory_space<vmem>>, vector<1x8x128xf32>
    %12 = vector.shape_cast %11 : vector<1x8x128xf32> to vector<8x128xf32>
    %13 = arith.index_cast %c0_i32_1 : i32 to index
    %c0_7 = arith.constant 0 : index
    %c0_8 = arith.constant 0 : index
    %14 = vector.load %arg5[%13, %c0_7, %c0_8] : memref<1x8x128xf32, #tpu.memory_space<vmem>>, vector<1x8x128xf32>
    %15 = vector.shape_cast %14 : vector<1x8x128xf32> to vector<8x128xf32>
    %16 = arith.index_cast %c0_i32_1 : i32 to index
    %c0_9 = arith.constant 0 : index
    %c0_10 = arith.constant 0 : index
    %17 = vector.load %arg6[%16, %c0_9, %c0_10] : memref<1x8x128xf32, #tpu.memory_space<vmem>>, vector<1x8x128xf32>
    %18 = vector.shape_cast %17 : vector<1x8x128xf32> to vector<8x128xf32>
    %19 = arith.index_cast %c0_i32_1 : i32 to index
    %c0_11 = arith.constant 0 : index
    %c0_12 = arith.constant 0 : index
    %20 = vector.load %arg7[%19, %c0_11, %c0_12] : memref<1x8x128xf32, #tpu.memory_space<vmem>>, vector<1x8x128xf32>
    %21 = vector.shape_cast %20 : vector<1x8x128xf32> to vector<8x128xf32>
    %22 = arith.index_cast %c0_i32_1 : i32 to index
    %c0_13 = arith.constant 0 : index
    %c0_14 = arith.constant 0 : index
    %23 = vector.load %arg8[%22, %c0_13, %c0_14] : memref<1x8x128xf32, #tpu.memory_space<vmem>>, vector<1x8x128xf32>
    %24 = vector.shape_cast %23 : vector<1x8x128xf32> to vector<8x128xf32>
    %25 = arith.index_cast %c0_i32_1 : i32 to index
    %c0_15 = arith.constant 0 : index
    %c0_16 = arith.constant 0 : index
    %26 = vector.load %arg9[%25, %c0_15, %c0_16] : memref<1x8x128xf32, #tpu.memory_space<vmem>>, vector<1x8x128xf32>
    %27 = vector.shape_cast %26 : vector<1x8x128xf32> to vector<8x128xf32>
    %28 = arith.index_cast %c0_i32_1 : i32 to index
    %c0_17 = arith.constant 0 : index
    %c0_18 = arith.constant 0 : index
    %29 = vector.load %arg10[%28, %c0_17, %c0_18] : memref<1x8x128xf32, #tpu.memory_space<vmem>>, vector<1x8x128xf32>
    %30 = vector.shape_cast %29 : vector<1x8x128xf32> to vector<8x128xf32>
    %31 = arith.index_cast %c0_i32_1 : i32 to index
    %c0_19 = arith.constant 0 : index
    %c0_20 = arith.constant 0 : index
    %32 = vector.load %arg11[%31, %c0_19, %c0_20] : memref<1x8x128xf32, #tpu.memory_space<vmem>>, vector<1x8x128xf32>
    %33 = vector.shape_cast %32 : vector<1x8x128xf32> to vector<8x128xf32>
    %cst_21 = arith.constant 0.000000e+00 : f32
    %34 = vector.broadcast %cst_21 : f32 to vector<8x128xf32>
    %35 = arith.maximumf %21, %34 : vector<8x128xf32>
    %36 = math.absf %21 : vector<8x128xf32>
    %37 = arith.subf %36, %35 : vector<8x128xf32>
    %cst_22 = arith.constant 5.000000e-01 : f32
    %38 = vector.broadcast %cst_22 : f32 to vector<8x128xf32>
    %39 = arith.mulf %38, %6 : vector<8x128xf32>
    %40 = math.tanh %39 : vector<8x128xf32>
    %cst_23 = arith.constant 5.000000e-01 : f32
    %41 = vector.broadcast %cst_23 : f32 to vector<8x128xf32>
    %42 = arith.mulf %41, %40 : vector<8x128xf32>
    %cst_24 = arith.constant 5.000000e-01 : f32
    %43 = vector.broadcast %cst_24 : f32 to vector<8x128xf32>
    %44 = arith.addf %42, %43 : vector<8x128xf32>
    %cst_25 = arith.constant 5.000000e-01 : f32
    %45 = vector.broadcast %cst_25 : f32 to vector<8x128xf32>
    %46 = arith.mulf %45, %9 : vector<8x128xf32>
    %47 = math.tanh %46 : vector<8x128xf32>
    %cst_26 = arith.constant 5.000000e-01 : f32
    %48 = vector.broadcast %cst_26 : f32 to vector<8x128xf32>
    %49 = arith.mulf %48, %47 : vector<8x128xf32>
    %cst_27 = arith.constant 5.000000e-01 : f32
    %50 = vector.broadcast %cst_27 : f32 to vector<8x128xf32>
    %51 = arith.addf %49, %50 : vector<8x128xf32>
    %cst_28 = arith.constant -5.000000e+00 : f32
    %cst_29 = arith.constant 5.000000e+00 : f32
    %52 = vector.broadcast %cst_28 : f32 to vector<8x128xf32>
    %53 = arith.maximumf %52, %12 : vector<8x128xf32>
    %54 = vector.broadcast %cst_29 : f32 to vector<8x128xf32>
    %55 = arith.minimumf %54, %53 : vector<8x128xf32>
    %cst_30 = arith.constant -5.000000e+00 : f32
    %cst_31 = arith.constant 5.000000e+00 : f32
    %56 = vector.broadcast %cst_30 : f32 to vector<8x128xf32>
    %57 = arith.maximumf %56, %15 : vector<8x128xf32>
    %58 = vector.broadcast %cst_31 : f32 to vector<8x128xf32>
    %59 = arith.minimumf %58, %57 : vector<8x128xf32>
    %60 = math.absf %18 : vector<8x128xf32>
    %cst_32 = arith.constant 0.000000e+00 : f32
    %61 = vector.broadcast %cst_32 : f32 to vector<8x128xf32>
    %62 = arith.subf %61, %60 : vector<8x128xf32>
    %63 = math.exp %62 : vector<8x128xf32>
    %cst_33 = arith.constant 1.000000e+00 : f32
    %64 = vector.broadcast %cst_33 : f32 to vector<8x128xf32>
    %65 = arith.addf %64, %63 : vector<8x128xf32>
    %66 = math.log %65 : vector<8x128xf32>
    %cst_34 = arith.constant 0.000000e+00 : f32
    %67 = vector.broadcast %cst_34 : f32 to vector<8x128xf32>
    %68 = arith.maximumf %18, %67 : vector<8x128xf32>
    %69 = arith.addf %66, %68 : vector<8x128xf32>
    %cst_35 = arith.constant 1.000000e+02 : f32
    %70 = vector.broadcast %cst_35 : f32 to vector<8x128xf32>
    %71 = arith.minimumf %69, %70 : vector<8x128xf32>
    %72 = arith.subf %69, %18 : vector<8x128xf32>
    %cst_36 = arith.constant 1.000000e+02 : f32
    %73 = vector.broadcast %cst_36 : f32 to vector<8x128xf32>
    %74 = arith.minimumf %72, %73 : vector<8x128xf32>
    %75 = arith.subf %44, %24 : vector<8x128xf32>
    %76 = arith.subf %51, %27 : vector<8x128xf32>
    %77 = arith.subf %55, %30 : vector<8x128xf32>
    %78 = arith.subf %59, %33 : vector<8x128xf32>
    %79 = arith.mulf %75, %75 : vector<8x128xf32>
    %80 = arith.mulf %35, %79 : vector<8x128xf32>
    %81 = arith.addf %3, %80 : vector<8x128xf32>
    %82 = arith.mulf %76, %76 : vector<8x128xf32>
    %83 = arith.mulf %35, %82 : vector<8x128xf32>
    %84 = arith.addf %3, %83 : vector<8x128xf32>
    %85 = arith.mulf %77, %77 : vector<8x128xf32>
    %86 = arith.mulf %35, %85 : vector<8x128xf32>
    %87 = arith.addf %3, %86 : vector<8x128xf32>
    %88 = arith.mulf %78, %78 : vector<8x128xf32>
    %89 = arith.mulf %35, %88 : vector<8x128xf32>
    %90 = arith.addf %3, %89 : vector<8x128xf32>
    %91 = arith.mulf %35, %74 : vector<8x128xf32>
    %92 = arith.addf %3, %91 : vector<8x128xf32>
    %93 = arith.mulf %37, %71 : vector<8x128xf32>
    %94 = arith.addf %3, %93 : vector<8x128xf32>
    %95 = arith.addf %3, %35 : vector<8x128xf32>
    %96 = arith.addf %3, %37 : vector<8x128xf32>
    %c1_i32 = arith.constant 1 : i32
    %c0_37 = arith.constant 0 : index
    %c0_38 = arith.constant 0 : index
    %c0_39 = arith.constant 0 : index
    %97 = vector.load %arg12[%c0_37, %c0_38, %c0_39] : memref<8x8x128xf32, #tpu.memory_space<vmem>>, vector<1x8x128xf32>
    %98 = vector.shape_cast %97 : vector<1x8x128xf32> to vector<8x128xf32>
    %99 = arith.addf %98, %81 : vector<8x128xf32>
    %c0_40 = arith.constant 0 : index
    %c0_41 = arith.constant 0 : index
    %c0_42 = arith.constant 0 : index
    %100 = vector.load %arg12[%c0_40, %c0_41, %c0_42] : memref<8x8x128xf32, #tpu.memory_space<vmem>>, vector<1x8x128xf32>
    %101 = vector.shape_cast %100 : vector<1x8x128xf32> to vector<8x128xf32>
    %102 = vector.shape_cast %99 : vector<8x128xf32> to vector<1x8x128xf32>
    tpu.vector_store %arg12[%c0_40, %c0_41, %c0_42], %102 {strides = array<i32>} : memref<8x8x128xf32, #tpu.memory_space<vmem>>, vector<1x8x128xf32>,
    %c1 = arith.constant 1 : index
    %c0_43 = arith.constant 0 : index
    %c0_44 = arith.constant 0 : index
    %103 = vector.load %arg12[%c1, %c0_43, %c0_44] : memref<8x8x128xf32, #tpu.memory_space<vmem>>, vector<1x8x128xf32>
    %104 = vector.shape_cast %103 : vector<1x8x128xf32> to vector<8x128xf32>
    %105 = arith.addf %104, %84 : vector<8x128xf32>
    %c1_45 = arith.constant 1 : index
    %c0_46 = arith.constant 0 : index
    %c0_47 = arith.constant 0 : index
    %106 = vector.load %arg12[%c1_45, %c0_46, %c0_47] : memref<8x8x128xf32, #tpu.memory_space<vmem>>, vector<1x8x128xf32>
    %107 = vector.shape_cast %106 : vector<1x8x128xf32> to vector<8x128xf32>
    %108 = vector.shape_cast %105 : vector<8x128xf32> to vector<1x8x128xf32>
    tpu.vector_store %arg12[%c1_45, %c0_46, %c0_47], %108 {strides = array<i32>} : memref<8x8x128xf32, #tpu.memory_space<vmem>>, vector<1x8x128xf32>,
    %c2 = arith.constant 2 : index
    %c0_48 = arith.constant 0 : index
    %c0_49 = arith.constant 0 : index
    %109 = vector.load %arg12[%c2, %c0_48, %c0_49] : memref<8x8x128xf32, #tpu.memory_space<vmem>>, vector<1x8x128xf32>
    %110 = vector.shape_cast %109 : vector<1x8x128xf32> to vector<8x128xf32>
    %111 = arith.addf %110, %87 : vector<8x128xf32>
    %c2_50 = arith.constant 2 : index
    %c0_51 = arith.constant 0 : index
    %c0_52 = arith.constant 0 : index
    %112 = vector.load %arg12[%c2_50, %c0_51, %c0_52] : memref<8x8x128xf32, #tpu.memory_space<vmem>>, vector<1x8x128xf32>
    %113 = vector.shape_cast %112 : vector<1x8x128xf32> to vector<8x128xf32>
    %114 = vector.shape_cast %111 : vector<8x128xf32> to vector<1x8x128xf32>
    tpu.vector_store %arg12[%c2_50, %c0_51, %c0_52], %114 {strides = array<i32>} : memref<8x8x128xf32, #tpu.memory_space<vmem>>, vector<1x8x128xf32>,
    %c3 = arith.constant 3 : index
    %c0_53 = arith.constant 0 : index
    %c0_54 = arith.constant 0 : index
    %115 = vector.load %arg12[%c3, %c0_53, %c0_54] : memref<8x8x128xf32, #tpu.memory_space<vmem>>, vector<1x8x128xf32>
    %116 = vector.shape_cast %115 : vector<1x8x128xf32> to vector<8x128xf32>
    %117 = arith.addf %116, %90 : vector<8x128xf32>
    %c3_55 = arith.constant 3 : index
    %c0_56 = arith.constant 0 : index
    %c0_57 = arith.constant 0 : index
    %118 = vector.load %arg12[%c3_55, %c0_56, %c0_57] : memref<8x8x128xf32, #tpu.memory_space<vmem>>, vector<1x8x128xf32>
    %119 = vector.shape_cast %118 : vector<1x8x128xf32> to vector<8x128xf32>
    %120 = vector.shape_cast %117 : vector<8x128xf32> to vector<1x8x128xf32>
    tpu.vector_store %arg12[%c3_55, %c0_56, %c0_57], %120 {strides = array<i32>} : memref<8x8x128xf32, #tpu.memory_space<vmem>>, vector<1x8x128xf32>,
    %c4 = arith.constant 4 : index
    %c0_58 = arith.constant 0 : index
    %c0_59 = arith.constant 0 : index
    %121 = vector.load %arg12[%c4, %c0_58, %c0_59] : memref<8x8x128xf32, #tpu.memory_space<vmem>>, vector<1x8x128xf32>
    %122 = vector.shape_cast %121 : vector<1x8x128xf32> to vector<8x128xf32>
    %123 = arith.addf %122, %92 : vector<8x128xf32>
    %c4_60 = arith.constant 4 : index
    %c0_61 = arith.constant 0 : index
    %c0_62 = arith.constant 0 : index
    %124 = vector.load %arg12[%c4_60, %c0_61, %c0_62] : memref<8x8x128xf32, #tpu.memory_space<vmem>>, vector<1x8x128xf32>
    %125 = vector.shape_cast %124 : vector<1x8x128xf32> to vector<8x128xf32>
    %126 = vector.shape_cast %123 : vector<8x128xf32> to vector<1x8x128xf32>
    tpu.vector_store %arg12[%c4_60, %c0_61, %c0_62], %126 {strides = array<i32>} : memref<8x8x128xf32, #tpu.memory_space<vmem>>, vector<1x8x128xf32>,
    %c5 = arith.constant 5 : index
    %c0_63 = arith.constant 0 : index
    %c0_64 = arith.constant 0 : index
    %127 = vector.load %arg12[%c5, %c0_63, %c0_64] : memref<8x8x128xf32, #tpu.memory_space<vmem>>, vector<1x8x128xf32>
    %128 = vector.shape_cast %127 : vector<1x8x128xf32> to vector<8x128xf32>
    %129 = arith.addf %128, %94 : vector<8x128xf32>
    %c5_65 = arith.constant 5 : index
    %c0_66 = arith.constant 0 : index
    %c0_67 = arith.constant 0 : index
    %130 = vector.load %arg12[%c5_65, %c0_66, %c0_67] : memref<8x8x128xf32, #tpu.memory_space<vmem>>, vector<1x8x128xf32>
    %131 = vector.shape_cast %130 : vector<1x8x128xf32> to vector<8x128xf32>
    %132 = vector.shape_cast %129 : vector<8x128xf32> to vector<1x8x128xf32>
    tpu.vector_store %arg12[%c5_65, %c0_66, %c0_67], %132 {strides = array<i32>} : memref<8x8x128xf32, #tpu.memory_space<vmem>>, vector<1x8x128xf32>,
    %c6 = arith.constant 6 : index
    %c0_68 = arith.constant 0 : index
    %c0_69 = arith.constant 0 : index
    %133 = vector.load %arg12[%c6, %c0_68, %c0_69] : memref<8x8x128xf32, #tpu.memory_space<vmem>>, vector<1x8x128xf32>
    %134 = vector.shape_cast %133 : vector<1x8x128xf32> to vector<8x128xf32>
    %135 = arith.addf %134, %95 : vector<8x128xf32>
    %c6_70 = arith.constant 6 : index
    %c0_71 = arith.constant 0 : index
    %c0_72 = arith.constant 0 : index
    %136 = vector.load %arg12[%c6_70, %c0_71, %c0_72] : memref<8x8x128xf32, #tpu.memory_space<vmem>>, vector<1x8x128xf32>
    %137 = vector.shape_cast %136 : vector<1x8x128xf32> to vector<8x128xf32>
    %138 = vector.shape_cast %135 : vector<8x128xf32> to vector<1x8x128xf32>
    tpu.vector_store %arg12[%c6_70, %c0_71, %c0_72], %138 {strides = array<i32>} : memref<8x8x128xf32, #tpu.memory_space<vmem>>, vector<1x8x128xf32>,
    %c7 = arith.constant 7 : index
    %c0_73 = arith.constant 0 : index
    %c0_74 = arith.constant 0 : index
    %139 = vector.load %arg12[%c7, %c0_73, %c0_74] : memref<8x8x128xf32, #tpu.memory_space<vmem>>, vector<1x8x128xf32>
    %140 = vector.shape_cast %139 : vector<1x8x128xf32> to vector<8x128xf32>
    %141 = arith.addf %140, %96 : vector<8x128xf32>
    %c7_75 = arith.constant 7 : index
    %c0_76 = arith.constant 0 : index
    %c0_77 = arith.constant 0 : index
    %142 = vector.load %arg12[%c7_75, %c0_76, %c0_77] : memref<8x8x128xf32, #tpu.memory_space<vmem>>, vector<1x8x128xf32>
    %143 = vector.shape_cast %142 : vector<1x8x128xf32> to vector<8x128xf32>
    %144 = vector.shape_cast %141 : vector<8x128xf32> to vector<1x8x128xf32>
    tpu.vector_store %arg12[%c7_75, %c0_76, %c0_77], %144 {strides = array<i32>} : memref<8x8x128xf32, #tpu.memory_space<vmem>>, vector<1x8x128xf32>,
    return
  }
  func.func @transform_0(%arg0: i32, %arg1: i32) -> (i32, i32, i32) {
    %c1_i32 = arith.constant 1 : i32
    %0 = arith.muli %arg0, %c1_i32 : i32
    %1 = arith.addi %0, %arg1 : i32
    %c0_i32 = arith.constant 0 : i32
    %c0_i32_0 = arith.constant 0 : i32
    %c0_i32_1 = arith.constant 0 : i32
    return %1, %c0_i32, %c0_i32_0 : i32, i32, i32
  }
  func.func @transform_1(%arg0: i32, %arg1: i32) -> (i32, i32, i32) {
    %c1_i32 = arith.constant 1 : i32
    %0 = arith.muli %arg0, %c1_i32 : i32
    %1 = arith.addi %0, %arg1 : i32
    %c0_i32 = arith.constant 0 : i32
    %c0_i32_0 = arith.constant 0 : i32
    %c0_i32_1 = arith.constant 0 : i32
    return %1, %c0_i32, %c0_i32_0 : i32, i32, i32
  }
  func.func @transform_2(%arg0: i32, %arg1: i32) -> (i32, i32, i32) {
    %c1_i32 = arith.constant 1 : i32
    %0 = arith.muli %arg0, %c1_i32 : i32
    %1 = arith.addi %0, %arg1 : i32
    %c0_i32 = arith.constant 0 : i32
    %c0_i32_0 = arith.constant 0 : i32
    %c0_i32_1 = arith.constant 0 : i32
    return %1, %c0_i32, %c0_i32_0 : i32, i32, i32
  }
  func.func @transform_3(%arg0: i32, %arg1: i32) -> (i32, i32, i32) {
    %c1_i32 = arith.constant 1 : i32
    %0 = arith.muli %arg0, %c1_i32 : i32
    %1 = arith.addi %0, %arg1 : i32
    %c0_i32 = arith.constant 0 : i32
    %c0_i32_0 = arith.constant 0 : i32
    %c0_i32_1 = arith.constant 0 : i32
    return %1, %c0_i32, %c0_i32_0 : i32, i32, i32
  }
  func.func @transform_4(%arg0: i32, %arg1: i32) -> (i32, i32, i32) {
    %c1_i32 = arith.constant 1 : i32
    %0 = arith.muli %arg0, %c1_i32 : i32
    %1 = arith.addi %0, %arg1 : i32
    %c0_i32 = arith.constant 0 : i32
    %c0_i32_0 = arith.constant 0 : i32
    %c0_i32_1 = arith.constant 0 : i32
    return %1, %c0_i32, %c0_i32_0 : i32, i32, i32
  }
  func.func @transform_5(%arg0: i32, %arg1: i32) -> (i32, i32, i32) {
    %c1_i32 = arith.constant 1 : i32
    %0 = arith.muli %arg0, %c1_i32 : i32
    %1 = arith.addi %0, %arg1 : i32
    %c0_i32 = arith.constant 0 : i32
    %c0_i32_0 = arith.constant 0 : i32
    %c0_i32_1 = arith.constant 0 : i32
    return %1, %c0_i32, %c0_i32_0 : i32, i32, i32
  }
  func.func @transform_6(%arg0: i32, %arg1: i32) -> (i32, i32, i32) {
    %c1_i32 = arith.constant 1 : i32
    %0 = arith.muli %arg0, %c1_i32 : i32
    %1 = arith.addi %0, %arg1 : i32
    %c0_i32 = arith.constant 0 : i32
    %c0_i32_0 = arith.constant 0 : i32
    %c0_i32_1 = arith.constant 0 : i32
    return %1, %c0_i32, %c0_i32_0 : i32, i32, i32
  }
  func.func @transform_7(%arg0: i32, %arg1: i32) -> (i32, i32, i32) {
    %c1_i32 = arith.constant 1 : i32
    %0 = arith.muli %arg0, %c1_i32 : i32
    %1 = arith.addi %0, %arg1 : i32
    %c0_i32 = arith.constant 0 : i32
    %c0_i32_0 = arith.constant 0 : i32
    %c0_i32_1 = arith.constant 0 : i32
    return %1, %c0_i32, %c0_i32_0 : i32, i32, i32
  }
  func.func @transform_8(%arg0: i32, %arg1: i32) -> (i32, i32, i32) {
    %c1_i32 = arith.constant 1 : i32
    %0 = arith.muli %arg0, %c1_i32 : i32
    %1 = arith.addi %0, %arg1 : i32
    %c0_i32 = arith.constant 0 : i32
    %c0_i32_0 = arith.constant 0 : i32
    %c0_i32_1 = arith.constant 0 : i32
    return %1, %c0_i32, %c0_i32_0 : i32, i32, i32
  }
  func.func @transform_9(%arg0: i32, %arg1: i32) -> (i32, i32, i32) {
    %c1_i32 = arith.constant 1 : i32
    %0 = arith.muli %arg0, %c1_i32 : i32
    %1 = arith.addi %0, %arg1 : i32
    %c0_i32 = arith.constant 0 : i32
    %c0_i32_0 = arith.constant 0 : i32
    %c0_i32_1 = arith.constant 0 : i32
    return %1, %c0_i32, %c0_i32_0 : i32, i32, i32
  }
  func.func @transform_10(%arg0: i32, %arg1: i32) -> (i32, i32, i32) {
    %c0_i32 = arith.constant 0 : i32
    %c0_i32_0 = arith.constant 0 : i32
    %c0_i32_1 = arith.constant 0 : i32
    return %arg0, %c0_i32, %c0_i32_0 : i32, i32, i32
  }
}

</mosaic_0001>

<llo_original>
// kernel: squeeze.57
$region0: #{squeeze.57}
  %s0 = inlined_call_operand.vmem [shape: f32[2,3,1,16,16], index: 0, kind: input, shape index: {}]
  %s1 = inlined_call_operand.vmem [shape: f32[1536], index: 1, kind: output, shape index: {}]
  %v2 = vld [vmem:[%s0] ss:$8 sm:$0xf]
  %v3 = vld [vmem:[%s0] ss:$8 sm:$0xf0]
  %vm4 = vcmask 1047556
  %v5 = vsel %vm4, %v3, %v2
  %vm6 = vcmask 130048
  %7 = vst.msk [vmem:[%s1] sm:$0xff] %vm6, %v5
  %s8 = scalar_lea.vmem %s0, 64
  %v9 = vld [vmem:[%s8] ss:$8 sm:$0xf]
  %vm10 = vcmask 130048
  %s11 = scalar_lea.vmem %s1, 8
  %12 = vst.msk [vmem:[%s11] sm:$0xf] %vm10, %v9
  %s13 = scalar_lea.vmem %s0, 7
  %v14 = vld [vmem:[%s13] ss:$8 sm:$0xf]
  %s15 = scalar_lea.vmem %s0, 7
  %v16 = vld [vmem:[%s15] ss:$8 sm:$0xf0]
  %vm17 = vcmask 1047556
  %v18 = vsel %vm17, %v16, %v14
  %19 = vrot.lane.b32.xlu0 %v18, 112
  %v20 = vpop.permute.xlu0 %19
  %vm21 = vcmask 1048448
  %22 = vst.msk [vmem:[%s1] sm:$0xff] %vm21, %v20
  %s23 = scalar_lea.vmem %s0, 71
  %v24 = vld [vmem:[%s23] ss:$8 sm:$0xf]
  %25 = vrot.lane.b32.xlu0 %v24, 112
  %v26 = vpop.permute.xlu0 %25
  %vm27 = vcmask 1048448
  %s28 = scalar_lea.vmem %s1, 8
  %29 = vst.msk [vmem:[%s28] sm:$0xf] %vm27, %v26
  %s30 = scalar_lea.vmem %s0, 6
  %v31 = vld [vmem:[%s30] ss:$8 sm:$0xf]
  %s32 = scalar_lea.vmem %s0, 6
  %v33 = vld [vmem:[%s32] ss:$8 sm:$0xf0]
  %vm34 = vcmask 1047556
  %v35 = vsel %vm34, %v33, %v31
  %36 = vrot.lane.b32.xlu0 %v35, 96
  %v37 = vpop.permute.xlu0 %36
  %vm38 = vcmask 917248
  %39 = vst.msk [vmem:[%s1] sm:$0xff] %vm38, %v37
  %s40 = scalar_lea.vmem %s0, 70
  %v41 = vld [vmem:[%s40] ss:$8 sm:$0xf]
  %42 = vrot.lane.b32.xlu0 %v41, 96
  %v43 = vpop.permute.xlu0 %42
  %vm44 = vcmask 917248
  %s45 = scalar_lea.vmem %s1, 8
  %46 = vst.msk [vmem:[%s45] sm:$0xf] %vm44, %v43
  %s47 = scalar_lea.vmem %s0, 5
  %v48 = vld [vmem:[%s47] ss:$8 sm:$0xf]
  %s49 = scalar_lea.vmem %s0, 5
  %v50 = vld [vmem:[%s49] ss:$8 sm:$0xf0]
  %vm51 = vcmask 1047556
  %v52 = vsel %vm51, %v50, %v48
  %53 = vrot.lane.b32.xlu0 %v52, 80
  %v54 = vpop.permute.xlu0 %53
  %vm55 = vcmask 786048
  %56 = vst.msk [vmem:[%s1] sm:$0xff] %vm55, %v54
  %s57 = scalar_lea.vmem %s0, 69
  %v58 = vld [vmem:[%s57] ss:$8 sm:$0xf]
  %59 = vrot.lane.b32.xlu0 %v58, 80
  %v60 = vpop.permute.xlu0 %59
  %vm61 = vcmask 786048
  %s62 = scalar_lea.vmem %s1, 8
  %63 = vst.msk [vmem:[%s62] sm:$0xf] %vm61, %v60
  %s64 = scalar_lea.vmem %s0, 4
  %v65 = vld [vmem:[%s64] ss:$8 sm:$0xf]
  %s66 = scalar_lea.vmem %s0, 4
  %v67 = vld [vmem:[%s66] ss:$8 sm:$0xf0]
  %vm68 = vcmask 1047556
  %v69 = vsel %vm68, %v67, %v65
  %70 = vrot.lane.b32.xlu0 %v69, 64
  %v71 = vpop.permute.xlu0 %70
  %vm72 = vcmask 654848
  %73 = vst.msk [vmem:[%s1] sm:$0xff] %vm72, %v71
  %s74 = scalar_lea.vmem %s0, 68
  %v75 = vld [vmem:[%s74] ss:$8 sm:$0xf]
  %76 = vrot.lane.b32.xlu0 %v75, 64
  %v77 = vpop.permute.xlu0 %76
  %vm78 = vcmask 654848
  %s79 = scalar_lea.vmem %s1, 8
  %80 = vst.msk [vmem:[%s79] sm:$0xf] %vm78, %v77
  %s81 = scalar_lea.vmem %s0, 3
  %v82 = vld [vmem:[%s81] ss:$8 sm:$0xf]
  %s83 = scalar_lea.vmem %s0, 3
  %v84 = vld [vmem:[%s83] ss:$8 sm:$0xf0]
  %vm85 = vcmask 1047556
  %v86 = vsel %vm85, %v84, %v82
  %87 = vrot.lane.b32.xlu0 %v86, 48
  %v88 = vpop.permute.xlu0 %87
  %vm89 = vcmask 523648
  %90 = vst.msk [vmem:[%s1] sm:$0xff] %vm89, %v88
  %s91 = scalar_lea.vmem %s0, 67
  %v92 = vld [vmem:[%s91] ss:$8 sm:$0xf]
  %93 = vrot.lane.b32.xlu0 %v92, 48
  %v94 = vpop.permute.xlu0 %93
  %vm95 = vcmask 523648
  %s96 = scalar_lea.vmem %s1, 8
  %97 = vst.msk [vmem:[%s96] sm:$0xf] %vm95, %v94
  %s98 = scalar_lea.vmem %s0, 2
  %v99 = vld [vmem:[%s98] ss:$8 sm:$0xf]
  %s100 = scalar_lea.vmem %s0, 2
  %v101 = vld [vmem:[%s100] ss:$8 sm:$0xf0]
  %vm102 = vcmask 1047556
  %v103 = vsel %vm102, %v101, %v99
  %104 = vrot.lane.b32.xlu0 %v103, 32
  %v105 = vpop.permute.xlu0 %104
  %vm106 = vcmask 392448
  %107 = vst.msk [vmem:[%s1] sm:$0xff] %vm106, %v105
  %s108 = scalar_lea.vmem %s0, 66
  %v109 = vld [vmem:[%s108] ss:$8 sm:$0xf]
  %110 = vrot.lane.b32.xlu0 %v109, 32
  %v111 = vpop.permute.xlu0 %110
  %vm112 = vcmask 392448
  %s113 = scalar_lea.vmem %s1, 8
  %114 = vst.msk [vmem:[%s113] sm:$0xf] %vm112, %v111
  %s115 = scalar_lea.vmem %s0, 1
  %v116 = vld [vmem:[%s115] ss:$8 sm:$0xf]
  %s117 = scalar_lea.vmem %s0, 1
  %v118 = vld [vmem:[%s117] ss:$8 sm:$0xf0]
  %vm119 = vcmask 1047556
  %v120 = vsel %vm119, %v118, %v116
  %121 = vrot.lane.b32.xlu0 %v120, 16
  %v122 = vpop.permute.xlu0 %121
  %vm123 = vcmask 261248
  %124 = vst.msk [vmem:[%s1] sm:$0xff] %vm123, %v122
  %s125 = scalar_lea.vmem %s0, 65
  %v126 = vld [vmem:[%s125] ss:$8 sm:$0xf]
  %127 = vrot.lane.b32.xlu0 %v126, 16
  %v128 = vpop.permute.xlu0 %127
  %vm129 = vcmask 261248
  %s130 = scalar_lea.vmem %s1, 8
  %131 = vst.msk [vmem:[%s130] sm:$0xf] %vm129, %v128

// kernel: neg.2
$region0: #{neg.2}
  #allocation0 [shape = 's32[1]{0}', space=sflag, size = 0x4, scoped, tag = 'scoped memory for neg.2']
  %s0 = inlined_call_operand.vmem [shape: f32[4], index: 0, kind: input, shape index: {}]
  %s1 = inlined_call_operand.vmem [shape: f32[4], index: 1, kind: output, shape index: {}]
  %v2 = vld [vmem:[%s0] sm:$0x1]
  %3 = xla_tuple %v2
  %4 = xla_tuple %3
  %v5 = vxor.u32 %v2, 2147483648
  %6 = xla_tuple %v5
  %7 = vst [vmem:[%s1] sm:$0x1] %v5

// kernel: squeeze.80
$region0: #{squeeze.80}
  %s0 = inlined_call_operand.vmem [shape: f32[2,3,1,8,8], index: 0, kind: input, shape index: {}]
  %s1 = inlined_call_operand.vmem [shape: f32[384], index: 1, kind: output, shape index: {}]
  $region1: #{squeeze.80} parent=0
    #allocation0 [shape = 'u8[4096]{0}', space=vmem, size = 0x1000, scoped, tag = 'scoped mem for output reshape']
    %s2 = smov 3
    %v3 = vld [vmem:[%s0] ss:$16 sm:%s2]
    %s4 = scalar_lea.vmem %s0, 30
    %v5 = vld [vmem:[%s4] sm:$0x4]
    %vm6 = vcmask 1042434
    %v7 = vsel %vm6, %v5, %v3
    %vm8 = vcmask 64512
    %9 = vst.msk [vmem:[#allocation0] sm:$0x7] %vm8, %v7
    %s10 = scalar_lea.vmem %s0, 15
    %s11 = smov 3
    %v12 = vld [vmem:[%s10] ss:$16 sm:%s11]
    %s13 = scalar_lea.vmem %s0, 45
    %v14 = vld [vmem:[%s13] sm:$0x4]
    %vm15 = vcmask 1042434
    %v16 = vsel %vm15, %v14, %v12
    %17 = vrot.lane.b32.xlu0 %v16, 120
    %v18 = vpop.permute.xlu0 %17
    %vm19 = vcmask 1048512
    %20 = vst.msk [vmem:[#allocation0] sm:$0x7] %vm19, %v18
    %s21 = scalar_lea.vmem %s0, 14
    %s22 = smov 3
    %v23 = vld [vmem:[%s21] ss:$16 sm:%s22]
    %s24 = scalar_lea.vmem %s0, 44
    %v25 = vld [vmem:[%s24] sm:$0x4]
    %vm26 = vcmask 1042434
    %v27 = vsel %vm26, %v25, %v23
    %28 = vrot.lane.b32.xlu0 %v27, 112
    %v29 = vpop.permute.xlu0 %28
    %vm30 = vcmask 982912
    %31 = vst.msk [vmem:[#allocation0] sm:$0x7] %vm30, %v29
    %s32 = scalar_lea.vmem %s0, 13
    %s33 = smov 3
    %v34 = vld [vmem:[%s32] ss:$16 sm:%s33]
    %s35 = scalar_lea.vmem %s0, 43
    %v36 = vld [vmem:[%s35] sm:$0x4]
    %vm37 = vcmask 1042434
    %v38 = vsel %vm37, %v36, %v34
    %39 = vrot.lane.b32.xlu0 %v38, 104
    %v40 = vpop.permute.xlu0 %39
    %vm41 = vcmask 917312
    %42 = vst.msk [vmem:[#allocation0] sm:$0x7] %vm41, %v40
    %s43 = scalar_lea.vmem %s0, 12
    %s44 = smov 3
    %v45 = vld [vmem:[%s43] ss:$16 sm:%s44]
    %s46 = scalar_lea.vmem %s0, 42
    %v47 = vld [vmem:[%s46] sm:$0x4]
    %vm48 = vcmask 1042434
    %v49 = vsel %vm48, %v47, %v45
    %50 = vrot.lane.b32.xlu0 %v49, 96
    %v51 = vpop.permute.xlu0 %50
    %vm52 = vcmask 851712
    %53 = vst.msk [vmem:[#allocation0] sm:$0x7] %vm52, %v51
    %s54 = scalar_lea.vmem %s0, 11
    %s55 = smov 3
    %v56 = vld [vmem:[%s54] ss:$16 sm:%s55]
    %s57 = scalar_lea.vmem %s0, 41
    %v58 = vld [vmem:[%s57] sm:$0x4]
    %vm59 = vcmask 1042434
    %v60 = vsel %vm59, %v58, %v56
    %61 = vrot.lane.b32.xlu0 %v60, 88
    %v62 = vpop.permute.xlu0 %61
    %vm63 = vcmask 786112
    %64 = vst.msk [vmem:[#allocation0] sm:$0x7] %vm63, %v62
    %s65 = scalar_lea.vmem %s0, 10
    %s66 = smov 3
    %v67 = vld [vmem:[%s65] ss:$16 sm:%s66]
    %s68 = scalar_lea.vmem %s0, 40
    %v69 = vld [vmem:[%s68] sm:$0x4]
    %vm70 = vcmask 1042434
    %v71 = vsel %vm70, %v69, %v67
    %72 = vrot.lane.b32.xlu0 %v71, 80
    %v73 = vpop.permute.xlu0 %72
    %vm74 = vcmask 720512
    %75 = vst.msk [vmem:[#allocation0] sm:$0x7] %vm74, %v73
    %s76 = scalar_lea.vmem %s0, 9
    %s77 = smov 3
    %v78 = vld [vmem:[%s76] ss:$16 sm:%s77]
    %s79 = scalar_lea.vmem %s0, 39
    %v80 = vld [vmem:[%s79] sm:$0x4]
    %vm81 = vcmask 1042434
    %v82 = vsel %vm81, %v80, %v78
    %83 = vrot.lane.b32.xlu0 %v82, 72
    %v84 = vpop.permute.xlu0 %83
    %vm85 = vcmask 654912
    %86 = vst.msk [vmem:[#allocation0] sm:$0x7] %vm85, %v84
    %s87 = scalar_lea.vmem %s0, 8
    %s88 = smov 3
    %v89 = vld [vmem:[%s87] ss:$16 sm:%s88]
    %s90 = scalar_lea.vmem %s0, 38
    %v91 = vld [vmem:[%s90] sm:$0x4]
    %vm92 = vcmask 1042434
    %v93 = vsel %vm92, %v91, %v89
    %94 = vrot.lane.b32.xlu0 %v93, 64
    %v95 = vpop.permute.xlu0 %94
    %vm96 = vcmask 589312
    %97 = vst.msk [vmem:[#allocation0] sm:$0x7] %vm96, %v95
    %s98 = scalar_lea.vmem %s0, 7
    %s99 = smov 3
    %v100 = vld [vmem:[%s98] ss:$16 sm:%s99]
    %s101 = scalar_lea.vmem %s0, 37
    %v102 = vld [vmem:[%s101] sm:$0x4]
    %vm103 = vcmask 1042434
    %v104 = vsel %vm103, %v102, %v100
    %105 = vrot.lane.b32.xlu0 %v104, 56
    %v106 = vpop.permute.xlu0 %105
    %vm107 = vcmask 523712
    %108 = vst.msk [vmem:[#allocation0] sm:$0x7] %vm107, %v106
    %s109 = scalar_lea.vmem %s0, 6
    %s110 = smov 3
    %v111 = vld [vmem:[%s109] ss:$16 sm:%s110]
    %s112 = scalar_lea.vmem %s0, 36
    %v113 = vld [vmem:[%s112] sm:$0x4]
    %vm114 = vcmask 1042434
    %v115 = vsel %vm114, %v113, %v111
    %116 = vrot.lane.b32.xlu0 %v115, 48
    %v117 = vpop.permute.xlu0 %116
    %vm118 = vcmask 458112
    %119 = vst.msk [vmem:[#allocation0] sm:$0x7] %vm118, %v117
    %s120 = scalar_lea.vmem %s0, 5
    %s121 = smov 3
    %v122 = vld [vmem:[%s120] ss:$16 sm:%s121]
    %s123 = scalar_lea.vmem %s0, 35
    %v124 = vld [vmem:[%s123] sm:$0x4]
    %vm125 = vcmask 1042434
    %v126 = vsel %vm125, %v124, %v122
    %127 = vrot.lane.b32.xlu0 %v126, 40
    %v128 = vpop.permute.xlu0 %127
    %vm129 = vcmask 392512
    %130 = vst.msk [vmem:[#allocation0] sm:$0x7] %vm129, %v128
    %s131 = scalar_lea.vmem %s0, 4
    %s132 = smov 3
    %v133 = vld [vmem:[%s131] ss:$16 sm:%s132]
    %s134 = scalar_lea.vmem %s0, 34
    %v135 = vld [vmem:[%s134] sm:$0x4]
    %vm136 = vcmask 1042434
    %v137 = vsel %vm136, %v135, %v133
    %138 = vrot.lane.b32.xlu0 %v137, 32
    %v139 = vpop.permute.xlu0 %138
    %vm140 = vcmask 326912
    %141 = vst.msk [vmem:[#allocation0] sm:$0x7] %vm140, %v139
    %s142 = scalar_lea.vmem %s0, 3
    %s143 = smov 3
    %v144 = vld [vmem:[%s142] ss:$16 sm:%s143]
    %s145 = scalar_lea.vmem %s0, 33
    %v146 = vld [vmem:[%s145] sm:$0x4]
    %vm147 = vcmask 1042434
    %v148 = vsel %vm147, %v146, %v144
    %149 = vrot.lane.b32.xlu0 %v148, 24
    %v150 = vpop.permute.xlu0 %149
    %vm151 = vcmask 261312
    %152 = vst.msk [vmem:[#allocation0] sm:$0x7] %vm151, %v150
    %s153 = scalar_lea.vmem %s0, 2
    %s154 = smov 3
    %v155 = vld [vmem:[%s153] ss:$16 sm:%s154]
    %s156 = scalar_lea.vmem %s0, 32
    %v157 = vld [vmem:[%s156] sm:$0x4]
    %vm158 = vcmask 1042434
    %v159 = vsel %vm158, %v157, %v155
    %160 = vrot.lane.b32.xlu0 %v159, 16
    %v161 = vpop.permute.xlu0 %160
    %vm162 = vcmask 195712
    %163 = vst.msk [vmem:[#allocation0] sm:$0x7] %vm162, %v161
    %s164 = scalar_lea.vmem %s0, 1
    %s165 = smov 3
    %v166 = vld [vmem:[%s164] ss:$16 sm:%s165]
    %s167 = scalar_lea.vmem %s0, 31
    %v168 = vld [vmem:[%s167] sm:$0x4]
    %vm169 = vcmask 1042434
    %v170 = vsel %vm169, %v168, %v166
    %171 = vrot.lane.b32.xlu0 %v170, 8
    %v172 = vpop.permute.xlu0 %171
    %vm173 = vcmask 130112
    %174 = vst.msk [vmem:[#allocation0] sm:$0x7] %vm173, %v172
    %s176 = ssub.s32 16, 1
    %v177 = vld [vmem:[#allocation0] sm:%s176]
    %s179 = ssub.s32 16, 1
    %180 = vst [vmem:[%s1] sm:%s179] %v177

// kernel: _forward.2
$region0: #{_forward.2}
  #allocation0 [shape = 'u32[]', space=smem, size = 0x4, offset = 0x4, fixed_abs, tag = 'smem constant byte address 0x4 - core index']
  #allocation1 [shape = 'u32[72,128]{1,0:T(1,128)}', space=vmem, size = 0x9000, scoped, tag = 'internal scratch']
  %s0 = inlined_call_operand.vmem [shape: f32[2,8,128], index: 0, kind: input, shape index: {}]
  %s1 = inlined_call_operand.vmem [shape: f32[2,8,128], index: 1, kind: input, shape index: {}]
  %s2 = inlined_call_operand.vmem [shape: f32[2,8,128], index: 2, kind: input, shape index: {}]
  %s3 = inlined_call_operand.vmem [shape: f32[2,8,128], index: 3, kind: input, shape index: {}]
  %s4 = inlined_call_operand.vmem [shape: f32[2,8,128], index: 4, kind: input, shape index: {}]
  %s5 = inlined_call_operand.vmem [shape: f32[2,8,128], index: 5, kind: input, shape index: {}]
  %s6 = inlined_call_operand.vmem [shape: f32[2,8,128], index: 6, kind: input, shape index: {}]
  %s7 = inlined_call_operand.vmem [shape: f32[2,8,128], index: 7, kind: input, shape index: {}]
  %s8 = inlined_call_operand.vmem [shape: f32[2,8,128], index: 8, kind: input, shape index: {}]
  %s9 = inlined_call_operand.vmem [shape: f32[2,8,128], index: 9, kind: input, shape index: {}]
  %s10 = inlined_call_operand.vmem [shape: f32[8,8,128], index: 10, kind: output, shape index: {}]
  %s11 = sld [smem:[#allocation0]]
  $region54: #{_forward.2} parent=0
    _
  %s13 = ssub.s32 1, %s11
  %s14 = scalar_select 0, %s13, %s11
  // Predicated region
  $region2: #{_forward.2} parent=0 // pred_check
    _
  $region3: #{_forward.2} parent=0 // pred_check_branch
    %16 = sbr.rel (0) target = $region5
  $region4: #{_forward.2} parent=0 // pred_region
    %s17 = sadd.s32 0, 0
    %s18 = smul.u32 2, %s17
    %p19 = scmp.lt.s32.totalorder %s18, 1
    %s20 = scalar_select %p19, %s18, 1
    %s21 = smul.addr %s20, 8
    %s22 = scalar_lea.vmem %s0, %s21
    %s23 = sadd.s32 0, 0
    %s24 = smul.u32 2, %s23
  $region5: #{_forward.2} parent=0 // pred_fallthru
    _
  // Predicated region
  $region6: #{_forward.2} parent=0 // pred_check
    _
  $region7: #{_forward.2} parent=0 // pred_check_branch
    %26 = sbr.rel (0) target = $region9
  $region8: #{_forward.2} parent=0 // pred_region
    %s27 = sadd.s32 0, 0
    %s28 = smul.u32 2, %s27
    %p29 = scmp.lt.s32.totalorder %s28, 1
    %s30 = scalar_select %p29, %s28, 1
    %s31 = smul.addr %s30, 8
    %s32 = scalar_lea.vmem %s1, %s31
    %s33 = sadd.s32 0, 0
    %s34 = smul.u32 2, %s33
  $region9: #{_forward.2} parent=0 // pred_fallthru
    _
  // Predicated region
  $region10: #{_forward.2} parent=0 // pred_check
    _
  $region11: #{_forward.2} parent=0 // pred_check_branch
    %36 = sbr.rel (0) target = $region13
  $region12: #{_forward.2} parent=0 // pred_region
    %s37 = sadd.s32 0, 0
    %s38 = smul.u32 2, %s37
    %p39 = scmp.lt.s32.totalorder %s38, 1
    %s40 = scalar_select %p39, %s38, 1
    %s41 = smul.addr %s40, 8
    %s42 = scalar_lea.vmem %s2, %s41
    %s43 = sadd.s32 0, 0
    %s44 = smul.u32 2, %s43
  $region13: #{_forward.2} parent=0 // pred_fallthru
    _
  // Predicated region
  $region14: #{_forward.2} parent=0 // pred_check
    _
  $region15: #{_forward.2} parent=0 // pred_check_branch
    %46 = sbr.rel (0) target = $region17
  $region16: #{_forward.2} parent=0 // pred_region
    %s47 = sadd.s32 0, 0
    %s48 = smul.u32 2, %s47
    %p49 = scmp.lt.s32.totalorder %s48, 1
    %s50 = scalar_select %p49, %s48, 1
    %s51 = smul.addr %s50, 8
    %s52 = scalar_lea.vmem %s3, %s51
    %s53 = sadd.s32 0, 0
    %s54 = smul.u32 2, %s53
  $region17: #{_forward.2} parent=0 // pred_fallthru
    _
  // Predicated region
  $region18: #{_forward.2} parent=0 // pred_check
    _
  $region19: #{_forward.2} parent=0 // pred_check_branch
    %56 = sbr.rel (0) target = $region21
  $region20: #{_forward.2} parent=0 // pred_region
    %s57 = sadd.s32 0, 0
    %s58 = smul.u32 2, %s57
    %p59 = scmp.lt.s32.totalorder %s58, 1
    %s60 = scalar_select %p59, %s58, 1
    %s61 = smul.addr %s60, 8
    %s62 = scalar_lea.vmem %s4, %s61
    %s63 = sadd.s32 0, 0
    %s64 = smul.u32 2, %s63
  $region21: #{_forward.2} parent=0 // pred_fallthru
    _
  // Predicated region
  $region22: #{_forward.2} parent=0 // pred_check
    _
  $region23: #{_forward.2} parent=0 // pred_check_branch
    %66 = sbr.rel (0) target = $region25
  $region24: #{_forward.2} parent=0 // pred_region
    %s67 = sadd.s32 0, 0
    %s68 = smul.u32 2, %s67
    %p69 = scmp.lt.s32.totalorder %s68, 1
    %s70 = scalar_select %p69, %s68, 1
    %s71 = smul.addr %s70, 8
    %s72 = scalar_lea.vmem %s5, %s71
    %s73 = sadd.s32 0, 0
    %s74 = smul.u32 2, %s73
  $region25: #{_forward.2} parent=0 // pred_fallthru
    _
  // Predicated region
  $region26: #{_forward.2} parent=0 // pred_check
    _
  $region27: #{_forward.2} parent=0 // pred_check_branch
    %76 = sbr.rel (0) target = $region29
  $region28: #{_forward.2} parent=0 // pred_region
    %s77 = sadd.s32 0, 0
    %s78 = smul.u32 2, %s77
    %p79 = scmp.lt.s32.totalorder %s78, 1
    %s80 = scalar_select %p79, %s78, 1
    %s81 = smul.addr %s80, 8
    %s82 = scalar_lea.vmem %s6, %s81
    %s83 = sadd.s32 0, 0
    %s84 = smul.u32 2, %s83
  $region29: #{_forward.2} parent=0 // pred_fallthru
    _
  // Predicated region
  $region30: #{_forward.2} parent=0 // pred_check
    _
  $region31: #{_forward.2} parent=0 // pred_check_branch
    %86 = sbr.rel (0) target = $region33
  $region32: #{_forward.2} parent=0 // pred_region
    %s87 = sadd.s32 0, 0
    %s88 = smul.u32 2, %s87
    %p89 = scmp.lt.s32.totalorder %s88, 1
    %s90 = scalar_select %p89, %s88, 1
    %s91 = smul.addr %s90, 8
    %s92 = scalar_lea.vmem %s7, %s91
    %s93 = sadd.s32 0, 0
    %s94 = smul.u32 2, %s93
  $region33: #{_forward.2} parent=0 // pred_fallthru
    _
  // Predicated region
  $region34: #{_forward.2} parent=0 // pred_check
    _
  $region35: #{_forward.2} parent=0 // pred_check_branch
    %96 = sbr.rel (0) target = $region37
  $region36: #{_forward.2} parent=0 // pred_region
    %s97 = sadd.s32 0, 0
    %s98 = smul.u32 2, %s97
    %p99 = scmp.lt.s32.totalorder %s98, 1
    %s100 = scalar_select %p99, %s98, 1
    %s101 = smul.addr %s100, 8
    %s102 = scalar_lea.vmem %s8, %s101
    %s103 = sadd.s32 0, 0
    %s104 = smul.u32 2, %s103
  $region37: #{_forward.2} parent=0 // pred_fallthru
    _
  // Predicated region
  $region38: #{_forward.2} parent=0 // pred_check
    _
  $region39: #{_forward.2} parent=0 // pred_check_branch
    %106 = sbr.rel (0) target = $region41
  $region40: #{_forward.2} parent=0 // pred_region
    %s107 = sadd.s32 0, 0
    %s108 = smul.u32 2, %s107
    %p109 = scmp.lt.s32.totalorder %s108, 1
    %s110 = scalar_select %p109, %s108, 1
    %s111 = smul.addr %s110, 8
    %s112 = scalar_lea.vmem %s9, %s111
    %s113 = sadd.s32 0, 0
    %s114 = smul.u32 2, %s113
  $region41: #{_forward.2} parent=0 // pred_fallthru
    _
  %s115 = sadd.s32 0, 0
  %s116 = smul.u32 2, %s115
  %p117 = scmp.lt.s32.totalorder %s116, 1
  %s118 = scalar_select %p117, %s116, 1
  %s119 = smul.addr %s118, 8
  %s120 = scalar_lea.vmem %s0, %s119
  %s121 = sadd.s32 0, 0
  %s122 = smul.u32 2, %s121
  %p123 = scmp.lt.s32.totalorder %s122, 1
  %s124 = scalar_select %p123, %s122, 1
  %s125 = smul.addr %s124, 8
  %s126 = scalar_lea.vmem %s1, %s125
  %s127 = sadd.s32 0, 0
  %s128 = smul.u32 2, %s127
  %p129 = scmp.lt.s32.totalorder %s128, 1
  %s130 = scalar_select %p129, %s128, 1
  %s131 = smul.addr %s130, 8
  %s132 = scalar_lea.vmem %s2, %s131
  %s133 = sadd.s32 0, 0
  %s134 = smul.u32 2, %s133
  %p135 = scmp.lt.s32.totalorder %s134, 1
  %s136 = scalar_select %p135, %s134, 1
  %s137 = smul.addr %s136, 8
  %s138 = scalar_lea.vmem %s3, %s137
  %s139 = sadd.s32 0, 0
  %s140 = smul.u32 2, %s139
  %p141 = scmp.lt.s32.totalorder %s140, 1
  %s142 = scalar_select %p141, %s140, 1
  %s143 = smul.addr %s142, 8
  %s144 = scalar_lea.vmem %s4, %s143
  %s145 = sadd.s32 0, 0
  %s146 = smul.u32 2, %s145
  %p147 = scmp.lt.s32.totalorder %s146, 1
  %s148 = scalar_select %p147, %s146, 1
  %s149 = smul.addr %s148, 8
  %s150 = scalar_lea.vmem %s5, %s149
  %s151 = sadd.s32 0, 0
  %s152 = smul.u32 2, %s151
  %p153 = scmp.lt.s32.totalorder %s152, 1
  %s154 = scalar_select %p153, %s152, 1
  %s155 = smul.addr %s154, 8
  %s156 = scalar_lea.vmem %s6, %s155
  %s157 = sadd.s32 0, 0
  %s158 = smul.u32 2, %s157
  %p159 = scmp.lt.s32.totalorder %s158, 1
  %s160 = scalar_select %p159, %s158, 1
  %s161 = smul.addr %s160, 8
  %s162 = scalar_lea.vmem %s7, %s161
  %s163 = sadd.s32 0, 0
  %s164 = smul.u32 2, %s163
  %p165 = scmp.lt.s32.totalorder %s164, 1
  %s166 = scalar_select %p165, %s164, 1
  %s167 = smul.addr %s166, 8
  %s168 = scalar_lea.vmem %s8, %s167
  %s169 = sadd.s32 0, 0
  %s170 = smul.u32 2, %s169
  %p171 = scmp.lt.s32.totalorder %s170, 1
  %s172 = scalar_select %p171, %s170, 1
  %s173 = smul.addr %s172, 8
  %s174 = scalar_lea.vmem %s9, %s173
  %s175 = sadd.s32 0, 0
  %s176 = smul.u32 2, %s175
  %p177 = scmp.lt.s32.totalorder %s176, 1
  %s178 = scalar_select %p177, %s176, 1
  %s179 = smul.addr %s178, 8
  %s180 = scalar_lea.vmem %s0, %s179
  %s181 = sadd.s32 0, 0
  %s182 = smul.u32 2, %s181
  %s183 = sadd.s32 0, 0
  %s184 = smul.u32 2, %s183
  %p185 = scmp.lt.s32.totalorder %s184, 1
  %s186 = scalar_select %p185, %s184, 1
  %s187 = smul.addr %s186, 8
  %s188 = scalar_lea.vmem %s1, %s187
  %s189 = sadd.s32 0, 0
  %s190 = smul.u32 2, %s189
  %s191 = sadd.s32 0, 0
  %s192 = smul.u32 2, %s191
  %p193 = scmp.lt.s32.totalorder %s192, 1
  %s194 = scalar_select %p193, %s192, 1
  %s195 = smul.addr %s194, 8
  %s196 = scalar_lea.vmem %s2, %s195
  %s197 = sadd.s32 0, 0
  %s198 = smul.u32 2, %s197
  %s199 = sadd.s32 0, 0
  %s200 = smul.u32 2, %s199
  %p201 = scmp.lt.s32.totalorder %s200, 1
  %s202 = scalar_select %p201, %s200, 1
  %s203 = smul.addr %s202, 8
  %s204 = scalar_lea.vmem %s3, %s203
  %s205 = sadd.s32 0, 0
  %s206 = smul.u32 2, %s205
  %s207 = sadd.s32 0, 0
  %s208 = smul.u32 2, %s207
  %p209 = scmp.lt.s32.totalorder %s208, 1
  %s210 = scalar_select %p209, %s208, 1
  %s211 = smul.addr %s210, 8
  %s212 = scalar_lea.vmem %s4, %s211
  %s213 = sadd.s32 0, 0
  %s214 = smul.u32 2, %s213
  %s215 = sadd.s32 0, 0
  %s216 = smul.u32 2, %s215
  %p217 = scmp.lt.s32.totalorder %s216, 1
  %s218 = scalar_select %p217, %s216, 1
  %s219 = smul.addr %s218, 8
  %s220 = scalar_lea.vmem %s5, %s219
  %s221 = sadd.s32 0, 0
  %s222 = smul.u32 2, %s221
  %s223 = sadd.s32 0, 0
  %s224 = smul.u32 2, %s223
  %p225 = scmp.lt.s32.totalorder %s224, 1
  %s226 = scalar_select %p225, %s224, 1
  %s227 = smul.addr %s226, 8
  %s228 = scalar_lea.vmem %s6, %s227
  %s229 = sadd.s32 0, 0
  %s230 = smul.u32 2, %s229
  %s231 = sadd.s32 0, 0
  %s232 = smul.u32 2, %s231
  %p233 = scmp.lt.s32.totalorder %s232, 1
  %s234 = scalar_select %p233, %s232, 1
  %s235 = smul.addr %s234, 8
  %s236 = scalar_lea.vmem %s7, %s235
  %s237 = sadd.s32 0, 0
  %s238 = smul.u32 2, %s237
  %s239 = sadd.s32 0, 0
  %s240 = smul.u32 2, %s239
  %p241 = scmp.lt.s32.totalorder %s240, 1
  %s242 = scalar_select %p241, %s240, 1
  %s243 = smul.addr %s242, 8
  %s244 = scalar_lea.vmem %s8, %s243
  %s245 = sadd.s32 0, 0
  %s246 = smul.u32 2, %s245
  %s247 = sadd.s32 0, 0
  %s248 = smul.u32 2, %s247
  %p249 = scmp.lt.s32.totalorder %s248, 1
  %s250 = scalar_select %p249, %s248, 1
  %s251 = smul.addr %s250, 8
  %s252 = scalar_lea.vmem %s9, %s251
  %s253 = sadd.s32 0, 0
  %s254 = smul.u32 2, %s253
  %p255 = scmp.eq.s32.totalorder 0, 0
  // Predicated region
  $region42: #{_forward.2} parent=0 // pred_check
    %p256 = pneg %p255
  $region43: #{_forward.2} parent=0 // pred_check_branch
    %258 = sbr.rel (%p256) target = $region45
  $region44: #{_forward.2} parent=0 // pred_region
    %259 = vst [vmem:[%s10] sm:$0xff] 0.0
    %260 = vst [vmem:[%s10 + $0x8] sm:$0xff] 0.0
    %261 = vst [vmem:[%s10 + $0x10] sm:$0xff] 0.0
    %262 = vst [vmem:[%s10 + $0x18] sm:$0xff] 0.0
    %263 = vst [vmem:[%s10 + $0x20] sm:$0xff] 0.0
    %264 = vst [vmem:[%s10 + $0x28] sm:$0xff] 0.0
    %265 = vst [vmem:[%s10 + $0x30] sm:$0xff] 0.0
    %266 = vst [vmem:[%s10 + $0x38] sm:$0xff] 0.0
  $region45: #{_forward.2} parent=0 // pred_fallthru
    _
  %v267 = vld [vmem:[%s180] sm:$0xff]
  %v268 = vld [vmem:[%s188] sm:$0xff]
  %v269 = vld [vmem:[%s196] sm:$0xff]
  %v270 = vld [vmem:[%s204] sm:$0xff]
  %v271 = vld [vmem:[%s212] sm:$0xff]
  %v272 = vld [vmem:[%s220] sm:$0xff]
  %v273 = vld [vmem:[%s228] sm:$0xff]
  %v274 = vld [vmem:[%s236] sm:$0xff]
  %v275 = vld [vmem:[%s244] sm:$0xff]
  %v276 = vld [vmem:[%s252] sm:$0xff]
  %v277 = vmax.f32 %v272, 0.0
  %v278 = vand.u32 2147483647, %v272
  %v279 = vsub.f32 %v278, %v277
  %v280 = vmul.f32 %v267, 0.5
  %v281 = vtanh.pop %v280
  %v282 = vmul.f32 %v281, 0.5
  %v283 = vadd.f32 %v282, 0.5
  %v284 = vmul.f32 %v268, 0.5
  %v285 = vtanh.pop %v284
  %v286 = vmul.f32 %v285, 0.5
  %v287 = vadd.f32 %v286, 0.5
  %v288 = vmax.f32 %v269, -5.0
  %v289 = vmin.f32 %v288, 5.0
  %v290 = vmax.f32 %v270, -5.0
  %v291 = vmin.f32 %v290, 5.0
  %v292 = vand.u32 2147483647, %v271
  %v293 = vsub.f32 0.0, %v292
  %v294 = vmul.f32 %v293, 1.442695
  %v295 = vpow.pop %v294
  %v296 = vadd.f32 %v295, 1.0
  %v297 = vlog2.pop %v296
  %v298 = vmul.f32 %v297, 0.6931472
  %v299 = vmax.f32 %v271, 0.0
  %v300 = vadd.f32 %v298, %v299
  %v301 = vmin.f32 %v300, 100.0
  %v302 = vsub.f32 %v300, %v271
  %v303 = vmin.f32 %v302, 100.0
  %v304 = vsub.f32 %v283, %v273
  %v305 = vsub.f32 %v287, %v274
  %v306 = vsub.f32 %v289, %v275
  %v307 = vsub.f32 %v291, %v276
  %v308 = vmul.f32 %v304, %v304
  %v309 = vmul.f32 %v277, %v308
  %v310 = vadd.f32 %v309, 0.0
  %v311 = vmul.f32 %v305, %v305
  %v312 = vmul.f32 %v277, %v311
  %v313 = vadd.f32 %v312, 0.0
  %v314 = vmul.f32 %v306, %v306
  %v315 = vmul.f32 %v277, %v314
  %v316 = vadd.f32 %v315, 0.0
  %v317 = vmul.f32 %v307, %v307
  %v318 = vmul.f32 %v277, %v317
  %v319 = vadd.f32 %v318, 0.0
  %v320 = vmul.f32 %v277, %v303
  %v321 = vadd.f32 %v320, 0.0
  %v322 = vmul.f32 %v279, %v301
  %v323 = vadd.f32 %v322, 0.0
  %v324 = vadd.f32 %v277, 0.0
  %v325 = vadd.f32 %v279, 0.0
  %s326 = scalar_lea.vmem %s180, 8
  %v327 = vld [vmem:[%s326] sm:$0xff]
  %s328 = scalar_lea.vmem %s188, 8
  %v329 = vld [vmem:[%s328] sm:$0xff]
  %s330 = scalar_lea.vmem %s196, 8
  %v331 = vld [vmem:[%s330] sm:$0xff]
  %s332 = scalar_lea.vmem %s204, 8
  %v333 = vld [vmem:[%s332] sm:$0xff]
  %s334 = scalar_lea.vmem %s212, 8
  %v335 = vld [vmem:[%s334] sm:$0xff]
  %s336 = scalar_lea.vmem %s220, 8
  %v337 = vld [vmem:[%s336] sm:$0xff]
  %s338 = scalar_lea.vmem %s228, 8
  %v339 = vld [vmem:[%s338] sm:$0xff]
  %s340 = scalar_lea.vmem %s236, 8
  %v341 = vld [vmem:[%s340] sm:$0xff]
  %s342 = scalar_lea.vmem %s244, 8
  %v343 = vld [vmem:[%s342] sm:$0xff]
  %s344 = scalar_lea.vmem %s252, 8
  %v345 = vld [vmem:[%s344] sm:$0xff]
  %v346 = vmax.f32 %v337, 0.0
  %v347 = vand.u32 2147483647, %v337
  %v348 = vsub.f32 %v347, %v346
  %v349 = vmul.f32 %v327, 0.5
  %v350 = vtanh.pop %v349
  %v351 = vmul.f32 %v350, 0.5
  %v352 = vadd.f32 %v351, 0.5
  %v353 = vmul.f32 %v329, 0.5
  %v354 = vtanh.pop %v353
  %v355 = vmul.f32 %v354, 0.5
  %v356 = vadd.f32 %v355, 0.5
  %v357 = vmax.f32 %v331, -5.0
  %v358 = vmin.f32 %v357, 5.0
  %v359 = vmax.f32 %v333, -5.0
  %v360 = vmin.f32 %v359, 5.0
  %v361 = vand.u32 2147483647, %v335
  %v362 = vsub.f32 0.0, %v361
  %v363 = vmul.f32 %v362, 1.442695
  %v364 = vpow.pop %v363
  %v365 = vadd.f32 %v364, 1.0
  %v366 = vlog2.pop %v365
  %v367 = vmul.f32 %v366, 0.6931472
  %v368 = vmax.f32 %v335, 0.0
  %v369 = vadd.f32 %v367, %v368
  %v370 = vmin.f32 %v369, 100.0
  %v371 = vsub.f32 %v369, %v335
  %v372 = vmin.f32 %v371, 100.0
  %v373 = vsub.f32 %v352, %v339
  %v374 = vsub.f32 %v356, %v341
  %v375 = vsub.f32 %v358, %v343
  %v376 = vsub.f32 %v360, %v345
  %v377 = vmul.f32 %v373, %v373
  %v378 = vmul.f32 %v346, %v377
  %v379 = vadd.f32 %v310, %v378
  %v380 = vmul.f32 %v374, %v374
  %v381 = vmul.f32 %v346, %v380
  %v382 = vadd.f32 %v313, %v381
  %v383 = vmul.f32 %v375, %v375
  %v384 = vmul.f32 %v346, %v383
  %v385 = vadd.f32 %v316, %v384
  %v386 = vmul.f32 %v376, %v376
  %v387 = vmul.f32 %v346, %v386
  %v388 = vadd.f32 %v319, %v387
  %v389 = vmul.f32 %v346, %v372
  %v390 = vadd.f32 %v321, %v389
  %v391 = vmul.f32 %v348, %v370
  %v392 = vadd.f32 %v323, %v391
  %v393 = vadd.f32 %v324, %v346
  %v394 = vadd.f32 %v325, %v348
  %v395 = vld [vmem:[%s10] sm:$0xff]
  %v396 = vadd.f32 %v395, %v379
  %397 = vst [vmem:[%s10] sm:$0xff] %v396
  %s398 = scalar_lea.vmem %s10, 8
  %v399 = vld [vmem:[%s398] sm:$0xff]
  %v400 = vadd.f32 %v399, %v382
  %401 = vst [vmem:[%s398] sm:$0xff] %v400
  %s402 = scalar_lea.vmem %s10, 16
  %v403 = vld [vmem:[%s402] sm:$0xff]
  %v404 = vadd.f32 %v403, %v385
  %405 = vst [vmem:[%s402] sm:$0xff] %v404
  %s406 = scalar_lea.vmem %s10, 24
  %v407 = vld [vmem:[%s406] sm:$0xff]
  %v408 = vadd.f32 %v407, %v388
  %409 = vst [vmem:[%s406] sm:$0xff] %v408
  %s410 = scalar_lea.vmem %s10, 32
  %v411 = vld [vmem:[%s410] sm:$0xff]
  %v412 = vadd.f32 %v411, %v390
  %413 = vst [vmem:[%s410] sm:$0xff] %v412
  %s414 = scalar_lea.vmem %s10, 40
  %v415 = vld [vmem:[%s414] sm:$0xff]
  %v416 = vadd.f32 %v415, %v392
  %417 = vst [vmem:[%s414] sm:$0xff] %v416
  %s418 = scalar_lea.vmem %s10, 48
  %v419 = vld [vmem:[%s418] sm:$0xff]
  %v420 = vadd.f32 %v419, %v393
  %421 = vst [vmem:[%s418] sm:$0xff] %v420
  %s422 = scalar_lea.vmem %s10, 56
  %v423 = vld [vmem:[%s422] sm:$0xff]
  %v424 = vadd.f32 %v423, %v394
  %425 = vst [vmem:[%s422] sm:$0xff] %v424
  // Predicated region
  $region46: #{_forward.2} parent=0 // pred_check
    _
  $region47: #{_forward.2} parent=0 // pred_check_branch
    %427 = sbr.rel (0) target = $region49
  $region48: #{_forward.2} parent=0 // pred_region
    _
  $region49: #{_forward.2} parent=0 // pred_fallthru
    _
  // Predicated region
  $region50: #{_forward.2} parent=0 // pred_check
    _
  $region51: #{_forward.2} parent=0 // pred_check_branch
    %429 = sbr.rel (0) target = $region53
  $region52: #{_forward.2} parent=0 // pred_region
    _
  $region53: #{_forward.2} parent=0 // pred_fallthru
    _

// kernel: _forward.3
$region0: #{_forward.3}
  #allocation0 [shape = 'u32[]', space=smem, size = 0x4, offset = 0x4, fixed_abs, tag = 'smem constant byte address 0x4 - core index']
  #allocation1 [shape = 'u32[72,128]{1,0:T(1,128)}', space=vmem, size = 0x9000, scoped, tag = 'internal scratch']
  %s0 = inlined_call_operand.vmem [shape: f32[1,8,128], index: 0, kind: input, shape index: {}]
  %s1 = inlined_call_operand.vmem [shape: f32[1,8,128], index: 1, kind: input, shape index: {}]
  %s2 = inlined_call_operand.vmem [shape: f32[1,8,128], index: 2, kind: input, shape index: {}]
  %s3 = inlined_call_operand.vmem [shape: f32[1,8,128], index: 3, kind: input, shape index: {}]
  %s4 = inlined_call_operand.vmem [shape: f32[1,8,128], index: 4, kind: input, shape index: {}]
  %s5 = inlined_call_operand.vmem [shape: f32[1,8,128], index: 5, kind: input, shape index: {}]
  %s6 = inlined_call_operand.vmem [shape: f32[1,8,128], index: 6, kind: input, shape index: {}]
  %s7 = inlined_call_operand.vmem [shape: f32[1,8,128], index: 7, kind: input, shape index: {}]
  %s8 = inlined_call_operand.vmem [shape: f32[1,8,128], index: 8, kind: input, shape index: {}]
  %s9 = inlined_call_operand.vmem [shape: f32[1,8,128], index: 9, kind: input, shape index: {}]
  %s10 = inlined_call_operand.vmem [shape: f32[8,8,128], index: 10, kind: output, shape index: {}]
  %s11 = sld [smem:[#allocation0]]
  $region54: #{_forward.3} parent=0
    _
  %s13 = ssub.s32 1, %s11
  %s14 = scalar_select 0, %s13, %s11
  // Predicated region
  $region2: #{_forward.3} parent=0 // pred_check
    _
  $region3: #{_forward.3} parent=0 // pred_check_branch
    %16 = sbr.rel (0) target = $region5
  $region4: #{_forward.3} parent=0 // pred_region
    %s17 = sadd.s32 0, 0
    %p18 = scmp.lt.s32.totalorder %s17, 0
    %s19 = scalar_select %p18, %s17, 0
    %s20 = smul.addr %s19, 8
    %s21 = scalar_lea.vmem %s0, %s20
    %s22 = sadd.s32 0, 0
  $region5: #{_forward.3} parent=0 // pred_fallthru
    _
  // Predicated region
  $region6: #{_forward.3} parent=0 // pred_check
    _
  $region7: #{_forward.3} parent=0 // pred_check_branch
    %24 = sbr.rel (0) target = $region9
  $region8: #{_forward.3} parent=0 // pred_region
    %s25 = sadd.s32 0, 0
    %p26 = scmp.lt.s32.totalorder %s25, 0
    %s27 = scalar_select %p26, %s25, 0
    %s28 = smul.addr %s27, 8
    %s29 = scalar_lea.vmem %s1, %s28
    %s30 = sadd.s32 0, 0
  $region9: #{_forward.3} parent=0 // pred_fallthru
    _
  // Predicated region
  $region10: #{_forward.3} parent=0 // pred_check
    _
  $region11: #{_forward.3} parent=0 // pred_check_branch
    %32 = sbr.rel (0) target = $region13
  $region12: #{_forward.3} parent=0 // pred_region
    %s33 = sadd.s32 0, 0
    %p34 = scmp.lt.s32.totalorder %s33, 0
    %s35 = scalar_select %p34, %s33, 0
    %s36 = smul.addr %s35, 8
    %s37 = scalar_lea.vmem %s2, %s36
    %s38 = sadd.s32 0, 0
  $region13: #{_forward.3} parent=0 // pred_fallthru
    _
  // Predicated region
  $region14: #{_forward.3} parent=0 // pred_check
    _
  $region15: #{_forward.3} parent=0 // pred_check_branch
    %40 = sbr.rel (0) target = $region17
  $region16: #{_forward.3} parent=0 // pred_region
    %s41 = sadd.s32 0, 0
    %p42 = scmp.lt.s32.totalorder %s41, 0
    %s43 = scalar_select %p42, %s41, 0
    %s44 = smul.addr %s43, 8
    %s45 = scalar_lea.vmem %s3, %s44
    %s46 = sadd.s32 0, 0
  $region17: #{_forward.3} parent=0 // pred_fallthru
    _
  // Predicated region
  $region18: #{_forward.3} parent=0 // pred_check
    _
  $region19: #{_forward.3} parent=0 // pred_check_branch
    %48 = sbr.rel (0) target = $region21
  $region20: #{_forward.3} parent=0 // pred_region
    %s49 = sadd.s32 0, 0
    %p50 = scmp.lt.s32.totalorder %s49, 0
    %s51 = scalar_select %p50, %s49, 0
    %s52 = smul.addr %s51, 8
    %s53 = scalar_lea.vmem %s4, %s52
    %s54 = sadd.s32 0, 0
  $region21: #{_forward.3} parent=0 // pred_fallthru
    _
  // Predicated region
  $region22: #{_forward.3} parent=0 // pred_check
    _
  $region23: #{_forward.3} parent=0 // pred_check_branch
    %56 = sbr.rel (0) target = $region25
  $region24: #{_forward.3} parent=0 // pred_region
    %s57 = sadd.s32 0, 0
    %p58 = scmp.lt.s32.totalorder %s57, 0
    %s59 = scalar_select %p58, %s57, 0
    %s60 = smul.addr %s59, 8
    %s61 = scalar_lea.vmem %s5, %s60
    %s62 = sadd.s32 0, 0
  $region25: #{_forward.3} parent=0 // pred_fallthru
    _
  // Predicated region
  $region26: #{_forward.3} parent=0 // pred_check
    _
  $region27: #{_forward.3} parent=0 // pred_check_branch
    %64 = sbr.rel (0) target = $region29
  $region28: #{_forward.3} parent=0 // pred_region
    %s65 = sadd.s32 0, 0
    %p66 = scmp.lt.s32.totalorder %s65, 0
    %s67 = scalar_select %p66, %s65, 0
    %s68 = smul.addr %s67, 8
    %s69 = scalar_lea.vmem %s6, %s68
    %s70 = sadd.s32 0, 0
  $region29: #{_forward.3} parent=0 // pred_fallthru
    _
  // Predicated region
  $region30: #{_forward.3} parent=0 // pred_check
    _
  $region31: #{_forward.3} parent=0 // pred_check_branch
    %72 = sbr.rel (0) target = $region33
  $region32: #{_forward.3} parent=0 // pred_region
    %s73 = sadd.s32 0, 0
    %p74 = scmp.lt.s32.totalorder %s73, 0
    %s75 = scalar_select %p74, %s73, 0
    %s76 = smul.addr %s75, 8
    %s77 = scalar_lea.vmem %s7, %s76
    %s78 = sadd.s32 0, 0
  $region33: #{_forward.3} parent=0 // pred_fallthru
    _
  // Predicated region
  $region34: #{_forward.3} parent=0 // pred_check
    _
  $region35: #{_forward.3} parent=0 // pred_check_branch
    %80 = sbr.rel (0) target = $region37
  $region36: #{_forward.3} parent=0 // pred_region
    %s81 = sadd.s32 0, 0
    %p82 = scmp.lt.s32.totalorder %s81, 0
    %s83 = scalar_select %p82, %s81, 0
    %s84 = smul.addr %s83, 8
    %s85 = scalar_lea.vmem %s8, %s84
    %s86 = sadd.s32 0, 0
  $region37: #{_forward.3} parent=0 // pred_fallthru
    _
  // Predicated region
  $region38: #{_forward.3} parent=0 // pred_check
    _
  $region39: #{_forward.3} parent=0 // pred_check_branch
    %88 = sbr.rel (0) target = $region41
  $region40: #{_forward.3} parent=0 // pred_region
    %s89 = sadd.s32 0, 0
    %p90 = scmp.lt.s32.totalorder %s89, 0
    %s91 = scalar_select %p90, %s89, 0
    %s92 = smul.addr %s91, 8
    %s93 = scalar_lea.vmem %s9, %s92
    %s94 = sadd.s32 0, 0
  $region41: #{_forward.3} parent=0 // pred_fallthru
    _
  %s95 = sadd.s32 0, 0
  %p96 = scmp.lt.s32.totalorder %s95, 0
  %s97 = scalar_select %p96, %s95, 0
  %s98 = smul.addr %s97, 8
  %s99 = scalar_lea.vmem %s0, %s98
  %s100 = sadd.s32 0, 0
  %p101 = scmp.lt.s32.totalorder %s100, 0
  %s102 = scalar_select %p101, %s100, 0
  %s103 = smul.addr %s102, 8
  %s104 = scalar_lea.vmem %s1, %s103
  %s105 = sadd.s32 0, 0
  %p106 = scmp.lt.s32.totalorder %s105, 0
  %s107 = scalar_select %p106, %s105, 0
  %s108 = smul.addr %s107, 8
  %s109 = scalar_lea.vmem %s2, %s108
  %s110 = sadd.s32 0, 0
  %p111 = scmp.lt.s32.totalorder %s110, 0
  %s112 = scalar_select %p111, %s110, 0
  %s113 = smul.addr %s112, 8
  %s114 = scalar_lea.vmem %s3, %s113
  %s115 = sadd.s32 0, 0
  %p116 = scmp.lt.s32.totalorder %s115, 0
  %s117 = scalar_select %p116, %s115, 0
  %s118 = smul.addr %s117, 8
  %s119 = scalar_lea.vmem %s4, %s118
  %s120 = sadd.s32 0, 0
  %p121 = scmp.lt.s32.totalorder %s120, 0
  %s122 = scalar_select %p121, %s120, 0
  %s123 = smul.addr %s122, 8
  %s124 = scalar_lea.vmem %s5, %s123
  %s125 = sadd.s32 0, 0
  %p126 = scmp.lt.s32.totalorder %s125, 0
  %s127 = scalar_select %p126, %s125, 0
  %s128 = smul.addr %s127, 8
  %s129 = scalar_lea.vmem %s6, %s128
  %s130 = sadd.s32 0, 0
  %p131 = scmp.lt.s32.totalorder %s130, 0
  %s132 = scalar_select %p131, %s130, 0
  %s133 = smul.addr %s132, 8
  %s134 = scalar_lea.vmem %s7, %s133
  %s135 = sadd.s32 0, 0
  %p136 = scmp.lt.s32.totalorder %s135, 0
  %s137 = scalar_select %p136, %s135, 0
  %s138 = smul.addr %s137, 8
  %s139 = scalar_lea.vmem %s8, %s138
  %s140 = sadd.s32 0, 0
  %p141 = scmp.lt.s32.totalorder %s140, 0
  %s142 = scalar_select %p141, %s140, 0
  %s143 = smul.addr %s142, 8
  %s144 = scalar_lea.vmem %s9, %s143
  %s145 = sadd.s32 0, 0
  %p146 = scmp.lt.s32.totalorder %s145, 0
  %s147 = scalar_select %p146, %s145, 0
  %s148 = smul.addr %s147, 8
  %s149 = scalar_lea.vmem %s0, %s148
  %s150 = sadd.s32 0, 0
  %s151 = sadd.s32 0, 0
  %p152 = scmp.lt.s32.totalorder %s151, 0
  %s153 = scalar_select %p152, %s151, 0
  %s154 = smul.addr %s153, 8
  %s155 = scalar_lea.vmem %s1, %s154
  %s156 = sadd.s32 0, 0
  %s157 = sadd.s32 0, 0
  %p158 = scmp.lt.s32.totalorder %s157, 0
  %s159 = scalar_select %p158, %s157, 0
  %s160 = smul.addr %s159, 8
  %s161 = scalar_lea.vmem %s2, %s160
  %s162 = sadd.s32 0, 0
  %s163 = sadd.s32 0, 0
  %p164 = scmp.lt.s32.totalorder %s163, 0
  %s165 = scalar_select %p164, %s163, 0
  %s166 = smul.addr %s165, 8
  %s167 = scalar_lea.vmem %s3, %s166
  %s168 = sadd.s32 0, 0
  %s169 = sadd.s32 0, 0
  %p170 = scmp.lt.s32.totalorder %s169, 0
  %s171 = scalar_select %p170, %s169, 0
  %s172 = smul.addr %s171, 8
  %s173 = scalar_lea.vmem %s4, %s172
  %s174 = sadd.s32 0, 0
  %s175 = sadd.s32 0, 0
  %p176 = scmp.lt.s32.totalorder %s175, 0
  %s177 = scalar_select %p176, %s175, 0
  %s178 = smul.addr %s177, 8
  %s179 = scalar_lea.vmem %s5, %s178
  %s180 = sadd.s32 0, 0
  %s181 = sadd.s32 0, 0
  %p182 = scmp.lt.s32.totalorder %s181, 0
  %s183 = scalar_select %p182, %s181, 0
  %s184 = smul.addr %s183, 8
  %s185 = scalar_lea.vmem %s6, %s184
  %s186 = sadd.s32 0, 0
  %s187 = sadd.s32 0, 0
  %p188 = scmp.lt.s32.totalorder %s187, 0
  %s189 = scalar_select %p188, %s187, 0
  %s190 = smul.addr %s189, 8
  %s191 = scalar_lea.vmem %s7, %s190
  %s192 = sadd.s32 0, 0
  %s193 = sadd.s32 0, 0
  %p194 = scmp.lt.s32.totalorder %s193, 0
  %s195 = scalar_select %p194, %s193, 0
  %s196 = smul.addr %s195, 8
  %s197 = scalar_lea.vmem %s8, %s196
  %s198 = sadd.s32 0, 0
  %s199 = sadd.s32 0, 0
  %p200 = scmp.lt.s32.totalorder %s199, 0
  %s201 = scalar_select %p200, %s199, 0
  %s202 = smul.addr %s201, 8
  %s203 = scalar_lea.vmem %s9, %s202
  %s204 = sadd.s32 0, 0
  %p205 = scmp.eq.s32.totalorder 0, 0
  // Predicated region
  $region42: #{_forward.3} parent=0 // pred_check
    %p206 = pneg %p205
  $region43: #{_forward.3} parent=0 // pred_check_branch
    %208 = sbr.rel (%p206) target = $region45
  $region44: #{_forward.3} parent=0 // pred_region
    %209 = vst [vmem:[%s10] sm:$0xff] 0.0
    %210 = vst [vmem:[%s10 + $0x8] sm:$0xff] 0.0
    %211 = vst [vmem:[%s10 + $0x10] sm:$0xff] 0.0
    %212 = vst [vmem:[%s10 + $0x18] sm:$0xff] 0.0
    %213 = vst [vmem:[%s10 + $0x20] sm:$0xff] 0.0
    %214 = vst [vmem:[%s10 + $0x28] sm:$0xff] 0.0
    %215 = vst [vmem:[%s10 + $0x30] sm:$0xff] 0.0
    %216 = vst [vmem:[%s10 + $0x38] sm:$0xff] 0.0
  $region45: #{_forward.3} parent=0 // pred_fallthru
    _
  %v217 = vld [vmem:[%s149] sm:$0xff]
  %v218 = vld [vmem:[%s155] sm:$0xff]
  %v219 = vld [vmem:[%s161] sm:$0xff]
  %v220 = vld [vmem:[%s167] sm:$0xff]
  %v221 = vld [vmem:[%s173] sm:$0xff]
  %v222 = vld [vmem:[%s179] sm:$0xff]
  %v223 = vld [vmem:[%s185] sm:$0xff]
  %v224 = vld [vmem:[%s191] sm:$0xff]
  %v225 = vld [vmem:[%s197] sm:$0xff]
  %v226 = vld [vmem:[%s203] sm:$0xff]
  %v227 = vmax.f32 %v222, 0.0
  %v228 = vand.u32 2147483647, %v222
  %v229 = vsub.f32 %v228, %v227
  %v230 = vmul.f32 %v217, 0.5
  %v231 = vtanh.pop %v230
  %v232 = vmul.f32 %v231, 0.5
  %v233 = vadd.f32 %v232, 0.5
  %v234 = vmul.f32 %v218, 0.5
  %v235 = vtanh.pop %v234
  %v236 = vmul.f32 %v235, 0.5
  %v237 = vadd.f32 %v236, 0.5
  %v238 = vmax.f32 %v219, -5.0
  %v239 = vmin.f32 %v238, 5.0
  %v240 = vmax.f32 %v220, -5.0
  %v241 = vmin.f32 %v240, 5.0
  %v242 = vand.u32 2147483647, %v221
  %v243 = vsub.f32 0.0, %v242
  %v244 = vmul.f32 %v243, 1.442695
  %v245 = vpow.pop %v244
  %v246 = vadd.f32 %v245, 1.0
  %v247 = vlog2.pop %v246
  %v248 = vmul.f32 %v247, 0.6931472
  %v249 = vmax.f32 %v221, 0.0
  %v250 = vadd.f32 %v248, %v249
  %v251 = vmin.f32 %v250, 100.0
  %v252 = vsub.f32 %v250, %v221
  %v253 = vmin.f32 %v252, 100.0
  %v254 = vsub.f32 %v233, %v223
  %v255 = vsub.f32 %v237, %v224
  %v256 = vsub.f32 %v239, %v225
  %v257 = vsub.f32 %v241, %v226
  %v258 = vmul.f32 %v254, %v254
  %v259 = vmul.f32 %v227, %v258
  %v260 = vadd.f32 %v259, 0.0
  %v261 = vmul.f32 %v255, %v255
  %v262 = vmul.f32 %v227, %v261
  %v263 = vadd.f32 %v262, 0.0
  %v264 = vmul.f32 %v256, %v256
  %v265 = vmul.f32 %v227, %v264
  %v266 = vadd.f32 %v265, 0.0
  %v267 = vmul.f32 %v257, %v257
  %v268 = vmul.f32 %v227, %v267
  %v269 = vadd.f32 %v268, 0.0
  %v270 = vmul.f32 %v227, %v253
  %v271 = vadd.f32 %v270, 0.0
  %v272 = vmul.f32 %v229, %v251
  %v273 = vadd.f32 %v272, 0.0
  %v274 = vadd.f32 %v227, 0.0
  %v275 = vadd.f32 %v229, 0.0
  %v276 = vld [vmem:[%s10] sm:$0xff]
  %v277 = vadd.f32 %v276, %v260
  %278 = vst [vmem:[%s10] sm:$0xff] %v277
  %s279 = scalar_lea.vmem %s10, 8
  %v280 = vld [vmem:[%s279] sm:$0xff]
  %v281 = vadd.f32 %v280, %v263
  %282 = vst [vmem:[%s279] sm:$0xff] %v281
  %s283 = scalar_lea.vmem %s10, 16
  %v284 = vld [vmem:[%s283] sm:$0xff]
  %v285 = vadd.f32 %v284, %v266
  %286 = vst [vmem:[%s283] sm:$0xff] %v285
  %s287 = scalar_lea.vmem %s10, 24
  %v288 = vld [vmem:[%s287] sm:$0xff]
  %v289 = vadd.f32 %v288, %v269
  %290 = vst [vmem:[%s287] sm:$0xff] %v289
  %s291 = scalar_lea.vmem %s10, 32
  %v292 = vld [vmem:[%s291] sm:$0xff]
  %v293 = vadd.f32 %v292, %v271
  %294 = vst [vmem:[%s291] sm:$0xff] %v293
  %s295 = scalar_lea.vmem %s10, 40
  %v296 = vld [vmem:[%s295] sm:$0xff]
  %v297 = vadd.f32 %v296, %v273
  %298 = vst [vmem:[%s295] sm:$0xff] %v297
  %s299 = scalar_lea.vmem %s10, 48
  %v300 = vld [vmem:[%s299] sm:$0xff]
  %v301 = vadd.f32 %v300, %v274
  %302 = vst [vmem:[%s299] sm:$0xff] %v301
  %s303 = scalar_lea.vmem %s10, 56
  %v304 = vld [vmem:[%s303] sm:$0xff]
  %v305 = vadd.f32 %v304, %v275
  %306 = vst [vmem:[%s303] sm:$0xff] %v305
  // Predicated region
  $region46: #{_forward.3} parent=0 // pred_check
    _
  $region47: #{_forward.3} parent=0 // pred_check_branch
    %308 = sbr.rel (0) target = $region49
  $region48: #{_forward.3} parent=0 // pred_region
    _
  $region49: #{_forward.3} parent=0 // pred_fallthru
    _
  // Predicated region
  $region50: #{_forward.3} parent=0 // pred_check
    _
  $region51: #{_forward.3} parent=0 // pred_check_branch
    %310 = sbr.rel (0) target = $region53
  $region52: #{_forward.3} parent=0 // pred_region
    _
  $region53: #{_forward.3} parent=0 // pred_fallthru
    _

</llo_original>
